<compile_context>
chip_gen: v6e
topology: v6e:2x2x1
jax: 0.10.0
libtpu: 0.0.40
codegen_flags: <defaults>
</compile_context>

<pallas_src>
import functools

import jax
import jax.numpy as jnp
from jax.experimental import pallas as pl
from jax.experimental.pallas import tpu as pltpu


# ---------------------------------------------------------------------------
# Tiling helpers
# ---------------------------------------------------------------------------
def _round_up(x, m):
    return (x + m - 1) // m * m


def _pad_and_tiles(num_nodes):
    """Padded node count + (TM, TK) tile sizes that divide it."""
    n_pad = _round_up(max(num_nodes, 8), 128)
    tm = next(t for t in (512, 256, 128) if n_pad % t == 0)
    tk = next(t for t in (2048, 1024, 512, 256, 128) if n_pad % t == 0)
    return n_pad, min(tm, n_pad), min(tk, n_pad)


# ---------------------------------------------------------------------------
# Kernels
# ---------------------------------------------------------------------------
def _sage_relu_kernel(a_ref, xk_ref, xi_ref, invd_ref, wl_ref, wr_ref, b_ref,
                      o_ref, acc_ref):
    """One SAGEConv layer + ReLU.  Accumulates A @ X over the k grid axis."""
    k = pl.program_id(1)

    @pl.when(k == 0)
    def _():
        acc_ref[...] = jnp.zeros_like(acc_ref)

    # bf16 x bf16 -> f32 accumulate: native MXU path.
    acc_ref[...] += jnp.dot(a_ref[...], xk_ref[...],
                            preferred_element_type=jnp.float32)

    @pl.when(k == pl.num_programs(1) - 1)
    def _():
        # Exact f32 mean normalization, then bf16 epilogue matmuls.
        agg = (acc_ref[...] * invd_ref[...]).astype(jnp.bfloat16)
        out = jnp.dot(agg, wl_ref[...], preferred_element_type=jnp.float32)
        out += jnp.dot(xi_ref[...], wr_ref[...],
                       preferred_element_type=jnp.float32)
        out += b_ref[...]
        o_ref[...] = jnp.maximum(out, 0.0).astype(o_ref.dtype)


def _sage_relu_linear_kernel(a_ref, xk_ref, xi_ref, invd_ref, wl_ref, wr_ref,
                             b_ref, wlin_ref, blin_ref, o_ref, acc_ref):
    """Second SAGEConv layer + ReLU with the final Linear fused in the epilogue."""
    k = pl.program_id(1)

    @pl.when(k == 0)
    def _():
        acc_ref[...] = jnp.zeros_like(acc_ref)

    acc_ref[...] += jnp.dot(a_ref[...], xk_ref[...],
                            preferred_element_type=jnp.float32)

    @pl.when(k == pl.num_programs(1) - 1)
    def _():
        agg = (acc_ref[...] * invd_ref[...]).astype(jnp.bfloat16)
        h = jnp.dot(agg, wl_ref[...], preferred_element_type=jnp.float32)
        h += jnp.dot(xi_ref[...], wr_ref[...],
                     preferred_element_type=jnp.float32)
        h += b_ref[...]
        h = jnp.maximum(h, 0.0).astype(jnp.bfloat16)
        # dropout (inference) -> identity, then fused Linear
        o_ref[...] = (jnp.dot(h, wlin_ref[...],
                              preferred_element_type=jnp.float32)
                      + blin_ref[...]).astype(o_ref.dtype)


# ---------------------------------------------------------------------------
# Wrappers
# ---------------------------------------------------------------------------
_COMPILER_PARAMS = pltpu.CompilerParams(
    dimension_semantics=("parallel", "arbitrary"),
    vmem_limit_bytes=32 * 1024 * 1024,
)


def _common_specs(f_in, h, tm, tk):
    return [
        pl.BlockSpec((tm, tk), lambda i, k: (i, k)),       # A (bf16 counts)
        pl.BlockSpec((tk, f_in), lambda i, k: (k, 0)),     # X rows for aggregation
        pl.BlockSpec((tm, f_in), lambda i, k: (i, 0)),     # X rows for root term
        pl.BlockSpec((tm, 1), lambda i, k: (i, 0)),        # 1/deg (f32)
        pl.BlockSpec((f_in, h), lambda i, k: (0, 0)),      # W_l (grid-invariant)
        pl.BlockSpec((f_in, h), lambda i, k: (0, 0)),      # W_r
        pl.BlockSpec((1, h), lambda i, k: (0, 0)),         # b_l
    ]


def sage_conv_relu(a_bf16, x, inv_deg, w_l, w_r, b_l, tm, tk):
    n_pad, f_in = x.shape
    h = w_l.shape[1]
    grid = (n_pad // tm, n_pad // tk)
    cost = pl.CostEstimate(
        flops=2 * n_pad * n_pad * f_in + 4 * n_pad * f_in * h,
        transcendentals=0,
        bytes_accessed=(n_pad * n_pad * 2 + 2 * n_pad * f_in * 2
                        + n_pad * h * 2),
    )
    return pl.pallas_call(
        _sage_relu_kernel,
        out_shape=jax.ShapeDtypeStruct((n_pad, h), jnp.bfloat16),
        grid_spec=pltpu.PrefetchScalarGridSpec(
            num_scalar_prefetch=0,
            grid=grid,
            in_specs=_common_specs(f_in, h, tm, tk),
            out_specs=pl.BlockSpec((tm, h), lambda i, k: (i, 0)),
            scratch_shapes=[pltpu.VMEM((tm, f_in), jnp.float32)],
        ),
        compiler_params=_COMPILER_PARAMS,
        cost_estimate=cost,
    )(a_bf16, x, x, inv_deg, w_l, w_r, b_l)


def sage_conv_relu_linear(a_bf16, x, inv_deg, w_l, w_r, b_l, w_lin, b_lin,
                          tm, tk):
    n_pad, f_in = x.shape
    h = w_l.shape[1]
    out_ch = w_lin.shape[1]
    grid = (n_pad // tm, n_pad // tk)
    cost = pl.CostEstimate(
        flops=(2 * n_pad * n_pad * f_in + 4 * n_pad * f_in * h
               + 2 * n_pad * h * out_ch),
        transcendentals=0,
        bytes_accessed=(n_pad * n_pad * 2 + 2 * n_pad * f_in * 2
                        + n_pad * out_ch * 4),
    )
    in_specs = _common_specs(f_in, h, tm, tk) + [
        pl.BlockSpec((h, out_ch), lambda i, k: (0, 0)),    # W_lin
        pl.BlockSpec((1, out_ch), lambda i, k: (0, 0)),    # b_lin
    ]
    return pl.pallas_call(
        _sage_relu_linear_kernel,
        out_shape=jax.ShapeDtypeStruct((n_pad, out_ch), jnp.float32),
        grid_spec=pltpu.PrefetchScalarGridSpec(
            num_scalar_prefetch=0,
            grid=grid,
            in_specs=in_specs,
            out_specs=pl.BlockSpec((tm, out_ch), lambda i, k: (i, 0)),
            scratch_shapes=[pltpu.VMEM((tm, f_in), jnp.float32)],
        ),
        compiler_params=_COMPILER_PARAMS,
        cost_estimate=cost,
    )(a_bf16, x, x, inv_deg, w_l, w_r, b_l, w_lin, b_lin)


def build_adjacency(edge_index, n_pad):
    """Edge-count matrix (bf16, exact small ints) + f32 1/deg column vector.

    Note: bf16 stores edge multiplicities exactly up to 256; multigraphs with
    higher per-pair multiplicity would round.
    """
    src = edge_index[0]
    dst = edge_index[1]
    a = jnp.zeros((n_pad, n_pad), jnp.float32)
    a = a.at[dst, src].add(1.0)                     # padded rows/cols stay zero
    deg = jnp.sum(a, axis=-1, keepdims=True)
    inv_deg = jnp.where(deg > 0.0, 1.0 / jnp.maximum(deg, 1.0), 0.0)
    return a.astype(jnp.bfloat16), inv_deg


def _pad2(w, rows, cols, dtype):
    return jnp.pad(w, ((0, rows - w.shape[0]), (0, cols - w.shape[1]))
                   ).astype(dtype)


def _pad_bias(b, cols):
    return jnp.pad(b.reshape(1, -1), ((0, 0), (0, cols - b.shape[0]))
                   ).astype(jnp.float32)


@functools.partial(jax.jit, static_argnames=("num_nodes",))
def gnn_forward(x, edge_index, params, num_nodes):
    n_pad, tm, tk = _pad_and_tiles(num_nodes)
    a_bf16, inv_deg = build_adjacency(edge_index, n_pad)

    in_ch = x.shape[1]
    hid = params["w1_l"].shape[1]
    out_ch = params["w_lin"].shape[1]
    # Lane-dense padding of every feature dimension to a 128-multiple.
    f_pad = _round_up(in_ch, 128)
    h_pad = _round_up(hid, 128)
    o_pad = _round_up(out_ch, 128)

    x_pad = jnp.pad(x, ((0, n_pad - num_nodes), (0, f_pad - in_ch))
                    ).astype(jnp.bfloat16)

    w1_l = _pad2(params["w1_l"], f_pad, h_pad, jnp.bfloat16)
    w1_r = _pad2(params["w1_r"], f_pad, h_pad, jnp.bfloat16)
    b1_l = _pad_bias(params["b1_l"], h_pad)
    w2_l = _pad2(params["w2_l"], h_pad, h_pad, jnp.bfloat16)
    w2_r = _pad2(params["w2_r"], h_pad, h_pad, jnp.bfloat16)
    b2_l = _pad_bias(params["b2_l"], h_pad)
    w_lin = _pad2(params["w_lin"], h_pad, o_pad, jnp.bfloat16)
    b_lin = _pad_bias(params["b_lin"], o_pad)

    h1 = sage_conv_relu(a_bf16, x_pad, inv_deg, w1_l, w1_r, b1_l, tm, tk)
    # dropout (inference) -> identity
    out = sage_conv_relu_linear(a_bf16, h1, inv_deg, w2_l, w2_r, b2_l,
                                w_lin, b_lin, tm, tk)
    # dropout (inference) -> identity (applied before the fused Linear)
    return out[:num_nodes, :out_ch]


# ---------------------------------------------------------------------------
# Pure-JAX reference (for correctness check)
# ---------------------------------------------------------------------------
def gnn_reference(x, edge_index, params, num_nodes):
    src, dst = edge_index[0], edge_index[1]
    a = jnp.zeros((num_nodes, num_nodes), jnp.float32).at[dst, src].add(1.0)
    a_norm = a / jnp.maximum(jnp.sum(a, axis=-1, keepdims=True), 1.0)

    def sage(xx, wl, wr, b):
        return jnp.maximum(a_norm @ xx @ wl + xx @ wr + b, 0.0)

    h = sage(x, params["w1_l"], params["w1_r"], params["b1_l"])
    h = sage(h, params["w2_l"], params["w2_r"], params["b2_l"])
    return h @ params["w_lin"] + params["b_lin"]


# ---------------------------------------------------------------------------
# Parameter init (deterministic, synthetic)
# ---------------------------------------------------------------------------
def init_params(key, in_channels, hidden_channels, out_channels):
    keys = jax.random.split(key, 7)

    def glorot(k, shape):
        fan_in, fan_out = shape
        scale = jnp.sqrt(6.0 / (fan_in + fan_out))
        return jax.random.uniform(k, shape, jnp.float32, -scale, scale)

    return {
        # SAGEConv1: lin_l (aggregated neighbors, with bias), lin_r (root, no bias)
        "w1_l": glorot(keys[0], (in_channels, hidden_channels)),
        "w1_r": glorot(keys[1], (in_channels, hidden_channels)),
        "b1_l": jnp.zeros((hidden_channels,), jnp.float32),
        # SAGEConv2
        "w2_l": glorot(keys[2], (hidden_channels, hidden_channels)),
        "w2_r": glorot(keys[3], (hidden_channels, hidden_channels)),
        "b2_l": jnp.zeros((hidden_channels,), jnp.float32),
        # Final Linear
        "w_lin": glorot(keys[4], (hidden_channels, out_channels)),
        "b_lin": jax.random.uniform(
            keys[5], (out_channels,), jnp.float32, -0.1, 0.1
        ),
    }


if __name__ == "__main__":
    NUM_NODES = 16
    IN_CHANNELS = 8
    HIDDEN = 32
    OUT_CHANNELS = 4
    NUM_EDGES = 48

    root = jax.random.PRNGKey(0)
    k_x, k_src, k_dst, k_params = jax.random.split(root, 4)

    x = jax.random.normal(k_x, (NUM_NODES, IN_CHANNELS), jnp.float32)
    src = jax.random.randint(k_src, (NUM_EDGES,), 0, NUM_NODES, jnp.int32)
    dst = jax.random.randint(k_dst, (NUM_EDGES,), 0, NUM_NODES, jnp.int32)
    edge_index = jnp.stack([src, dst], axis=0)  # [2, E]

    params = init_params(k_params, IN_CHANNELS, HIDDEN, OUT_CHANNELS)

    out = gnn_forward(x, edge_index, params, num_nodes=NUM_NODES)
    out = jax.block_until_ready(out)

    assert out.shape == (NUM_NODES, OUT_CHANNELS)
    assert out.dtype == jnp.float32

    ref = gnn_reference(x, edge_index, params, NUM_NODES)
    # bf16 inputs/weights with f32 accumulation across two layers -> ~1e-2
    # absolute error against the pure-f32 reference.
    assert jnp.allclose(out, ref, rtol=5e-2, atol=5e-2), (
        f"max abs err {jnp.max(jnp.abs(out - ref))}")

    print("KERNEL_OK")
</pallas_src>

<mosaic_0001>
module attributes {stable_mosaic.version = 11 : i64} {
  func.func private @main(%arg0: i32) attributes {dimension_semantics = [#tpu.dimension_semantics<core_parallel>], iteration_bounds = array<i64: 2>, tpu.core_type = #tpu.core_type<sc_scalar_subcore>, window_params = []} {
    return
  }
}

module attributes {stable_mosaic.version = 11 : i64} {
  func.func private @main(%arg0: i32) attributes {dimension_semantics = [#tpu.dimension_semantics<core_parallel>], iteration_bounds = array<i64: 2>, tpu.core_type = #tpu.core_type<sc_scalar_subcore>, window_params = []} {
    return
  }
}

module attributes {stable_mosaic.version = 11 : i64} {
  func.func @_sage_relu_linear_kernel(%arg0: i32, %arg1: i32, %arg2: memref<128x128xbf16, #tpu.memory_space<vmem>>, %arg3: memref<128x128xbf16, #tpu.memory_space<vmem>>, %arg4: memref<128x128xbf16, #tpu.memory_space<vmem>>, %arg5: memref<128x1xf32, #tpu.memory_space<vmem>>, %arg6: memref<128x128xbf16, #tpu.memory_space<vmem>>, %arg7: memref<128x128xbf16, #tpu.memory_space<vmem>>, %arg8: memref<1x128xf32, #tpu.memory_space<vmem>>, %arg9: memref<128x128xbf16, #tpu.memory_space<vmem>>, %arg10: memref<1x128xf32, #tpu.memory_space<vmem>>, %arg11: memref<128x128xf32, #tpu.memory_space<vmem>>, %arg12: memref<128x128xf32, #tpu.memory_space<vmem>>) attributes {dimension_semantics = [#tpu.dimension_semantics<parallel>, #tpu.dimension_semantics<arbitrary>], iteration_bounds = array<i64: 1, 1>, scalar_prefetch = 0 : i64, scratch_operands = 1 : i64, tpu.core_type = #tpu.core_type<tc>, window_params = [{transform_indices = @transform_0, window_bounds = array<i64: 128, 128>}, {transform_indices = @transform_1, window_bounds = array<i64: 128, 128>}, {transform_indices = @transform_2, window_bounds = array<i64: 128, 128>}, {transform_indices = @transform_3, window_bounds = array<i64: 128, 1>}, {pipeline_mode = #tpu.pipeline_mode<synchronous>, transform_indices = @transform_4, window_bounds = array<i64: 128, 128>}, {pipeline_mode = #tpu.pipeline_mode<synchronous>, transform_indices = @transform_5, window_bounds = array<i64: 128, 128>}, {pipeline_mode = #tpu.pipeline_mode<synchronous>, transform_indices = @transform_6, window_bounds = array<i64: 1, 128>}, {pipeline_mode = #tpu.pipeline_mode<synchronous>, transform_indices = @transform_7, window_bounds = array<i64: 128, 128>}, {pipeline_mode = #tpu.pipeline_mode<synchronous>, transform_indices = @transform_8, window_bounds = array<i64: 1, 128>}, {transform_indices = @transform_9, window_bounds = array<i64: 128, 128>}]} {
    %c0_i32 = arith.constant 0 : i32
    %0 = arith.cmpi eq, %arg1, %c0_i32 : i32
    %1 = arith.extui %0 : i1 to i32
    %c0_i32_0 = arith.constant 0 : i32
    %2 = arith.cmpi ne, %1, %c0_i32_0 : i32
    scf.if %2 {
      %cst_10 = arith.constant 0.000000e+00 : f32
      %12 = vector.broadcast %cst_10 : f32 to vector<128x128xf32>
      %c0_11 = arith.constant 0 : index
      %c0_12 = arith.constant 0 : index
      %13 = vector.load %arg12[%c0_11, %c0_12] : memref<128x128xf32, #tpu.memory_space<vmem>>, vector<128x128xf32>
      tpu.vector_store %arg12[%c0_11, %c0_12], %12 {strides = array<i32>} : memref<128x128xf32, #tpu.memory_space<vmem>>, vector<128x128xf32>,
    } else {
    }
    %c0 = arith.constant 0 : index
    %c0_1 = arith.constant 0 : index
    %3 = vector.load %arg12[%c0, %c0_1] : memref<128x128xf32, #tpu.memory_space<vmem>>, vector<128x128xf32>
    %c0_2 = arith.constant 0 : index
    %c0_3 = arith.constant 0 : index
    %4 = vector.load %arg2[%c0_2, %c0_3] : memref<128x128xbf16, #tpu.memory_space<vmem>>, vector<128x128xbf16>
    %c0_4 = arith.constant 0 : index
    %c0_5 = arith.constant 0 : index
    %5 = vector.load %arg3[%c0_4, %c0_5] : memref<128x128xbf16, #tpu.memory_space<vmem>>, vector<128x128xbf16>
    %cst = arith.constant dense<0.000000e+00> : vector<128x128xf32>
    %6 = tpu.matmul %4, %5, %cst {dimension_numbers = #tpu.dot_dimension_numbers<[1], [0], [0], [1], [0, 0, 1, 1], [], []>} : vector<128x128xbf16>, vector<128x128xbf16>, vector<128x128xf32> -> vector<128x128xf32>
    %7 = arith.addf %3, %6 : vector<128x128xf32>
    %c0_6 = arith.constant 0 : index
    %c0_7 = arith.constant 0 : index
    %8 = vector.load %arg12[%c0_6, %c0_7] : memref<128x128xf32, #tpu.memory_space<vmem>>, vector<128x128xf32>
    tpu.vector_store %arg12[%c0_6, %c0_7], %7 {strides = array<i32>} : memref<128x128xf32, #tpu.memory_space<vmem>>, vector<128x128xf32>,
    %c0_i32_8 = arith.constant 0 : i32
    %9 = arith.cmpi eq, %arg1, %c0_i32_8 : i32
    %10 = arith.extui %9 : i1 to i32
    %c0_i32_9 = arith.constant 0 : i32
    %11 = arith.cmpi ne, %10, %c0_i32_9 : i32
    scf.if %11 {
      %c0_10 = arith.constant 0 : index
      %c0_11 = arith.constant 0 : index
      %12 = vector.load %arg12[%c0_10, %c0_11] : memref<128x128xf32, #tpu.memory_space<vmem>>, vector<128x128xf32>
      %c0_12 = arith.constant 0 : index
      %c0_13 = arith.constant 0 : index
      %13 = vector.load %arg5[%c0_12, %c0_13] : memref<128x1xf32, #tpu.memory_space<vmem>>, vector<128x1xf32>
      %14 = vector.broadcast %13 : vector<128x1xf32> to vector<128x128xf32>
      %15 = arith.mulf %12, %14 : vector<128x128xf32>
      %16 = arith.truncf %15 : vector<128x128xf32> to vector<128x128xbf16>
      %c0_14 = arith.constant 0 : index
      %c0_15 = arith.constant 0 : index
      %17 = vector.load %arg6[%c0_14, %c0_15] : memref<128x128xbf16, #tpu.memory_space<vmem>>, vector<128x128xbf16>
      %cst_16 = arith.constant dense<0.000000e+00> : vector<128x128xf32>
      %18 = tpu.matmul %16, %17, %cst_16 {dimension_numbers = #tpu.dot_dimension_numbers<[1], [0], [0], [1], [0, 0, 1, 1], [], []>} : vector<128x128xbf16>, vector<128x128xbf16>, vector<128x128xf32> -> vector<128x128xf32>
      %c0_17 = arith.constant 0 : index
      %c0_18 = arith.constant 0 : index
      %19 = vector.load %arg4[%c0_17, %c0_18] : memref<128x128xbf16, #tpu.memory_space<vmem>>, vector<128x128xbf16>
      %c0_19 = arith.constant 0 : index
      %c0_20 = arith.constant 0 : index
      %20 = vector.load %arg7[%c0_19, %c0_20] : memref<128x128xbf16, #tpu.memory_space<vmem>>, vector<128x128xbf16>
      %cst_21 = arith.constant dense<0.000000e+00> : vector<128x128xf32>
      %21 = tpu.matmul %19, %20, %cst_21 {dimension_numbers = #tpu.dot_dimension_numbers<[1], [0], [0], [1], [0, 0, 1, 1], [], []>} : vector<128x128xbf16>, vector<128x128xbf16>, vector<128x128xf32> -> vector<128x128xf32>
      %22 = arith.addf %18, %21 : vector<128x128xf32>
      %c0_22 = arith.constant 0 : index
      %c0_23 = arith.constant 0 : index
      %23 = vector.load %arg8[%c0_22, %c0_23] : memref<1x128xf32, #tpu.memory_space<vmem>>, vector<1x128xf32>
      %24 = vector.broadcast %23 : vector<1x128xf32> to vector<128x128xf32>
      %25 = arith.addf %22, %24 : vector<128x128xf32>
      %cst_24 = arith.constant 0.000000e+00 : f32
      %26 = vector.broadcast %cst_24 : f32 to vector<128x128xf32>
      %27 = arith.maximumf %25, %26 : vector<128x128xf32>
      %28 = arith.truncf %27 : vector<128x128xf32> to vector<128x128xbf16>
      %c0_25 = arith.constant 0 : index
      %c0_26 = arith.constant 0 : index
      %29 = vector.load %arg9[%c0_25, %c0_26] : memref<128x128xbf16, #tpu.memory_space<vmem>>, vector<128x128xbf16>
      %cst_27 = arith.constant dense<0.000000e+00> : vector<128x128xf32>
      %30 = tpu.matmul %28, %29, %cst_27 {dimension_numbers = #tpu.dot_dimension_numbers<[1], [0], [0], [1], [0, 0, 1, 1], [], []>} : vector<128x128xbf16>, vector<128x128xbf16>, vector<128x128xf32> -> vector<128x128xf32>
      %c0_28 = arith.constant 0 : index
      %c0_29 = arith.constant 0 : index
      %31 = vector.load %arg10[%c0_28, %c0_29] : memref<1x128xf32, #tpu.memory_space<vmem>>, vector<1x128xf32>
      %32 = vector.broadcast %31 : vector<1x128xf32> to vector<128x128xf32>
      %33 = arith.addf %30, %32 : vector<128x128xf32>
      %c0_30 = arith.constant 0 : index
      %c0_31 = arith.constant 0 : index
      %34 = vector.load %arg11[%c0_30, %c0_31] : memref<128x128xf32, #tpu.memory_space<vmem>>, vector<128x128xf32>
      tpu.vector_store %arg11[%c0_30, %c0_31], %33 {strides = array<i32>} : memref<128x128xf32, #tpu.memory_space<vmem>>, vector<128x128xf32>,
    } else {
    }
    return
  }
  func.func @transform_0(%arg0: i32, %arg1: i32) -> (i32, i32) {
    %c0_i32 = arith.constant 0 : i32
    return %arg0, %arg1 : i32, i32
  }
  func.func @transform_1(%arg0: i32, %arg1: i32) -> (i32, i32) {
    %c0_i32 = arith.constant 0 : i32
    %c0_i32_0 = arith.constant 0 : i32
    return %arg1, %c0_i32 : i32, i32
  }
  func.func @transform_2(%arg0: i32, %arg1: i32) -> (i32, i32) {
    %c0_i32 = arith.constant 0 : i32
    %c0_i32_0 = arith.constant 0 : i32
    return %arg0, %c0_i32 : i32, i32
  }
  func.func @transform_3(%arg0: i32, %arg1: i32) -> (i32, i32) {
    %c0_i32 = arith.constant 0 : i32
    %c0_i32_0 = arith.constant 0 : i32
    return %arg0, %c0_i32 : i32, i32
  }
  func.func @transform_4(%arg0: i32, %arg1: i32) -> (i32, i32) {
    %c0_i32 = arith.constant 0 : i32
    %c0_i32_0 = arith.constant 0 : i32
    %c0_i32_1 = arith.constant 0 : i32
    return %c0_i32, %c0_i32_0 : i32, i32
  }
  func.func @transform_5(%arg0: i32, %arg1: i32) -> (i32, i32) {
    %c0_i32 = arith.constant 0 : i32
    %c0_i32_0 = arith.constant 0 : i32
    %c0_i32_1 = arith.constant 0 : i32
    return %c0_i32, %c0_i32_0 : i32, i32
  }
  func.func @transform_6(%arg0: i32, %arg1: i32) -> (i32, i32) {
    %c0_i32 = arith.constant 0 : i32
    %c0_i32_0 = arith.constant 0 : i32
    %c0_i32_1 = arith.constant 0 : i32
    return %c0_i32, %c0_i32_0 : i32, i32
  }
  func.func @transform_7(%arg0: i32, %arg1: i32) -> (i32, i32) {
    %c0_i32 = arith.constant 0 : i32
    %c0_i32_0 = arith.constant 0 : i32
    %c0_i32_1 = arith.constant 0 : i32
    return %c0_i32, %c0_i32_0 : i32, i32
  }
  func.func @transform_8(%arg0: i32, %arg1: i32) -> (i32, i32) {
    %c0_i32 = arith.constant 0 : i32
    %c0_i32_0 = arith.constant 0 : i32
    %c0_i32_1 = arith.constant 0 : i32
    return %c0_i32, %c0_i32_0 : i32, i32
  }
  func.func @transform_9(%arg0: i32, %arg1: i32) -> (i32, i32) {
    %c0_i32 = arith.constant 0 : i32
    %c0_i32_0 = arith.constant 0 : i32
    return %arg0, %c0_i32 : i32, i32
  }
}

module attributes {stable_mosaic.version = 11 : i64} {
  func.func @_sage_relu_kernel(%arg0: i32, %arg1: i32, %arg2: memref<128x128xbf16, #tpu.memory_space<vmem>>, %arg3: memref<128x128xbf16, #tpu.memory_space<vmem>>, %arg4: memref<128x128xbf16, #tpu.memory_space<vmem>>, %arg5: memref<128x1xf32, #tpu.memory_space<vmem>>, %arg6: memref<128x128xbf16, #tpu.memory_space<vmem>>, %arg7: memref<128x128xbf16, #tpu.memory_space<vmem>>, %arg8: memref<1x128xf32, #tpu.memory_space<vmem>>, %arg9: memref<128x128xbf16, #tpu.memory_space<vmem>>, %arg10: memref<128x128xf32, #tpu.memory_space<vmem>>) attributes {dimension_semantics = [#tpu.dimension_semantics<parallel>, #tpu.dimension_semantics<arbitrary>], iteration_bounds = array<i64: 1, 1>, scalar_prefetch = 0 : i64, scratch_operands = 1 : i64, tpu.core_type = #tpu.core_type<tc>, window_params = [{transform_indices = @transform_0, window_bounds = array<i64: 128, 128>}, {transform_indices = @transform_1, window_bounds = array<i64: 128, 128>}, {transform_indices = @transform_2, window_bounds = array<i64: 128, 128>}, {transform_indices = @transform_3, window_bounds = array<i64: 128, 1>}, {pipeline_mode = #tpu.pipeline_mode<synchronous>, transform_indices = @transform_4, window_bounds = array<i64: 128, 128>}, {pipeline_mode = #tpu.pipeline_mode<synchronous>, transform_indices = @transform_5, window_bounds = array<i64: 128, 128>}, {pipeline_mode = #tpu.pipeline_mode<synchronous>, transform_indices = @transform_6, window_bounds = array<i64: 1, 128>}, {transform_indices = @transform_7, window_bounds = array<i64: 128, 128>}]} {
    %c0_i32 = arith.constant 0 : i32
    %0 = arith.cmpi eq, %arg1, %c0_i32 : i32
    %1 = arith.extui %0 : i1 to i32
    %c0_i32_0 = arith.constant 0 : i32
    %2 = arith.cmpi ne, %1, %c0_i32_0 : i32
    scf.if %2 {
      %cst_10 = arith.constant 0.000000e+00 : f32
      %12 = vector.broadcast %cst_10 : f32 to vector<128x128xf32>
      %c0_11 = arith.constant 0 : index
      %c0_12 = arith.constant 0 : index
      %13 = vector.load %arg10[%c0_11, %c0_12] : memref<128x128xf32, #tpu.memory_space<vmem>>, vector<128x128xf32>
      tpu.vector_store %arg10[%c0_11, %c0_12], %12 {strides = array<i32>} : memref<128x128xf32, #tpu.memory_space<vmem>>, vector<128x128xf32>,
    } else {
    }
    %c0 = arith.constant 0 : index
    %c0_1 = arith.constant 0 : index
    %3 = vector.load %arg10[%c0, %c0_1] : memref<128x128xf32, #tpu.memory_space<vmem>>, vector<128x128xf32>
    %c0_2 = arith.constant 0 : index
    %c0_3 = arith.constant 0 : index
    %4 = vector.load %arg2[%c0_2, %c0_3] : memref<128x128xbf16, #tpu.memory_space<vmem>>, vector<128x128xbf16>
    %c0_4 = arith.constant 0 : index
    %c0_5 = arith.constant 0 : index
    %5 = vector.load %arg3[%c0_4, %c0_5] : memref<128x128xbf16, #tpu.memory_space<vmem>>, vector<128x128xbf16>
    %cst = arith.constant dense<0.000000e+00> : vector<128x128xf32>
    %6 = tpu.matmul %4, %5, %cst {dimension_numbers = #tpu.dot_dimension_numbers<[1], [0], [0], [1], [0, 0, 1, 1], [], []>} : vector<128x128xbf16>, vector<128x128xbf16>, vector<128x128xf32> -> vector<128x128xf32>
    %7 = arith.addf %3, %6 : vector<128x128xf32>
    %c0_6 = arith.constant 0 : index
    %c0_7 = arith.constant 0 : index
    %8 = vector.load %arg10[%c0_6, %c0_7] : memref<128x128xf32, #tpu.memory_space<vmem>>, vector<128x128xf32>
    tpu.vector_store %arg10[%c0_6, %c0_7], %7 {strides = array<i32>} : memref<128x128xf32, #tpu.memory_space<vmem>>, vector<128x128xf32>,
    %c0_i32_8 = arith.constant 0 : i32
    %9 = arith.cmpi eq, %arg1, %c0_i32_8 : i32
    %10 = arith.extui %9 : i1 to i32
    %c0_i32_9 = arith.constant 0 : i32
    %11 = arith.cmpi ne, %10, %c0_i32_9 : i32
    scf.if %11 {
      %c0_10 = arith.constant 0 : index
      %c0_11 = arith.constant 0 : index
      %12 = vector.load %arg10[%c0_10, %c0_11] : memref<128x128xf32, #tpu.memory_space<vmem>>, vector<128x128xf32>
      %c0_12 = arith.constant 0 : index
      %c0_13 = arith.constant 0 : index
      %13 = vector.load %arg5[%c0_12, %c0_13] : memref<128x1xf32, #tpu.memory_space<vmem>>, vector<128x1xf32>
      %14 = vector.broadcast %13 : vector<128x1xf32> to vector<128x128xf32>
      %15 = arith.mulf %12, %14 : vector<128x128xf32>
      %16 = arith.truncf %15 : vector<128x128xf32> to vector<128x128xbf16>
      %c0_14 = arith.constant 0 : index
      %c0_15 = arith.constant 0 : index
      %17 = vector.load %arg6[%c0_14, %c0_15] : memref<128x128xbf16, #tpu.memory_space<vmem>>, vector<128x128xbf16>
      %cst_16 = arith.constant dense<0.000000e+00> : vector<128x128xf32>
      %18 = tpu.matmul %16, %17, %cst_16 {dimension_numbers = #tpu.dot_dimension_numbers<[1], [0], [0], [1], [0, 0, 1, 1], [], []>} : vector<128x128xbf16>, vector<128x128xbf16>, vector<128x128xf32> -> vector<128x128xf32>
      %c0_17 = arith.constant 0 : index
      %c0_18 = arith.constant 0 : index
      %19 = vector.load %arg4[%c0_17, %c0_18] : memref<128x128xbf16, #tpu.memory_space<vmem>>, vector<128x128xbf16>
      %c0_19 = arith.constant 0 : index
      %c0_20 = arith.constant 0 : index
      %20 = vector.load %arg7[%c0_19, %c0_20] : memref<128x128xbf16, #tpu.memory_space<vmem>>, vector<128x128xbf16>
      %cst_21 = arith.constant dense<0.000000e+00> : vector<128x128xf32>
      %21 = tpu.matmul %19, %20, %cst_21 {dimension_numbers = #tpu.dot_dimension_numbers<[1], [0], [0], [1], [0, 0, 1, 1], [], []>} : vector<128x128xbf16>, vector<128x128xbf16>, vector<128x128xf32> -> vector<128x128xf32>
      %22 = arith.addf %18, %21 : vector<128x128xf32>
      %c0_22 = arith.constant 0 : index
      %c0_23 = arith.constant 0 : index
      %23 = vector.load %arg8[%c0_22, %c0_23] : memref<1x128xf32, #tpu.memory_space<vmem>>, vector<1x128xf32>
      %24 = vector.broadcast %23 : vector<1x128xf32> to vector<128x128xf32>
      %25 = arith.addf %22, %24 : vector<128x128xf32>
      %cst_24 = arith.constant 0.000000e+00 : f32
      %26 = vector.broadcast %cst_24 : f32 to vector<128x128xf32>
      %27 = arith.maximumf %25, %26 : vector<128x128xf32>
      %28 = arith.truncf %27 : vector<128x128xf32> to vector<128x128xbf16>
      %c0_25 = arith.constant 0 : index
      %c0_26 = arith.constant 0 : index
      %29 = vector.load %arg9[%c0_25, %c0_26] : memref<128x128xbf16, #tpu.memory_space<vmem>>, vector<128x128xbf16>
      tpu.vector_store %arg9[%c0_25, %c0_26], %28 {strides = array<i32>} : memref<128x128xbf16, #tpu.memory_space<vmem>>, vector<128x128xbf16>,
    } else {
    }
    return
  }
  func.func @transform_0(%arg0: i32, %arg1: i32) -> (i32, i32) {
    %c0_i32 = arith.constant 0 : i32
    return %arg0, %arg1 : i32, i32
  }
  func.func @transform_1(%arg0: i32, %arg1: i32) -> (i32, i32) {
    %c0_i32 = arith.constant 0 : i32
    %c0_i32_0 = arith.constant 0 : i32
    return %arg1, %c0_i32 : i32, i32
  }
  func.func @transform_2(%arg0: i32, %arg1: i32) -> (i32, i32) {
    %c0_i32 = arith.constant 0 : i32
    %c0_i32_0 = arith.constant 0 : i32
    return %arg0, %c0_i32 : i32, i32
  }
  func.func @transform_3(%arg0: i32, %arg1: i32) -> (i32, i32) {
    %c0_i32 = arith.constant 0 : i32
    %c0_i32_0 = arith.constant 0 : i32
    return %arg0, %c0_i32 : i32, i32
  }
  func.func @transform_4(%arg0: i32, %arg1: i32) -> (i32, i32) {
    %c0_i32 = arith.constant 0 : i32
    %c0_i32_0 = arith.constant 0 : i32
    %c0_i32_1 = arith.constant 0 : i32
    return %c0_i32, %c0_i32_0 : i32, i32
  }
  func.func @transform_5(%arg0: i32, %arg1: i32) -> (i32, i32) {
    %c0_i32 = arith.constant 0 : i32
    %c0_i32_0 = arith.constant 0 : i32
    %c0_i32_1 = arith.constant 0 : i32
    return %c0_i32, %c0_i32_0 : i32, i32
  }
  func.func @transform_6(%arg0: i32, %arg1: i32) -> (i32, i32) {
    %c0_i32 = arith.constant 0 : i32
    %c0_i32_0 = arith.constant 0 : i32
    %c0_i32_1 = arith.constant 0 : i32
    return %c0_i32, %c0_i32_0 : i32, i32
  }
  func.func @transform_7(%arg0: i32, %arg1: i32) -> (i32, i32) {
    %c0_i32 = arith.constant 0 : i32
    %c0_i32_0 = arith.constant 0 : i32
    return %arg0, %c0_i32 : i32, i32
  }
}

</mosaic_0001>

<llo_original>
// kernel: gnn_forward.3
$region0: #{gnn_forward.3}
  #allocation0 [shape = 'u32[]', space=smem, size = 0x4, offset = 0x4, fixed_abs, tag = 'smem constant byte address 0x4 - core index']
  #allocation1 [shape = 'u32[144,128]{1,0:T(1,128)}', space=vmem, size = 0x12000, scoped, tag = 'internal scratch']
  #allocation2 [shape = 'f32[128,128]{1,0:T(8,128)}', space=vmem, size = 0x10000, scoped, tag = 'scratch operand']
  %s0 = inlined_call_operand.vmem [shape: bf16[128,128], index: 0, kind: input, shape index: {}]
  %s1 = inlined_call_operand.vmem [shape: bf16[128,128], index: 1, kind: input, shape index: {}, may-alias: {1,2}]
  %s2 = inlined_call_operand.vmem [shape: bf16[128,128], index: 2, kind: input, shape index: {}, may-alias: {1,2}]
  %s3 = inlined_call_operand.vmem [shape: f32[128,1], index: 3, kind: input, shape index: {}]
  %s4 = inlined_call_operand.vmem [shape: bf16[128,128], index: 4, kind: input, shape index: {}]
  %s5 = inlined_call_operand.vmem [shape: bf16[128,128], index: 5, kind: input, shape index: {}]
  %s6 = inlined_call_operand.vmem [shape: f32[1,128], index: 6, kind: input, shape index: {}]
  %s7 = inlined_call_operand.vmem [shape: bf16[128,128], index: 7, kind: input, shape index: {}]
  %s8 = inlined_call_operand.vmem [shape: f32[1,128], index: 8, kind: input, shape index: {}]
  %s9 = inlined_call_operand.vmem [shape: f32[128,128], index: 9, kind: output, shape index: {}]
  %s10 = sld [smem:[#allocation0]]
  $region54: #{gnn_forward.3} parent=0
    _
  %s12 = ssub.s32 1, %s10
  %s13 = scalar_select 0, %s12, %s10
  // Predicated region
  $region2: #{gnn_forward.3} parent=0 // pred_check
    _
  $region3: #{gnn_forward.3} parent=0 // pred_check_branch
    %15 = sbr.rel (0) target = $region5
  $region4: #{gnn_forward.3} parent=0 // pred_region
    _
  $region5: #{gnn_forward.3} parent=0 // pred_fallthru
    _
  // Predicated region
  $region6: #{gnn_forward.3} parent=0 // pred_check
    _
  $region7: #{gnn_forward.3} parent=0 // pred_check_branch
    %17 = sbr.rel (0) target = $region9
  $region8: #{gnn_forward.3} parent=0 // pred_region
    _
  $region9: #{gnn_forward.3} parent=0 // pred_fallthru
    _
  // Predicated region
  $region10: #{gnn_forward.3} parent=0 // pred_check
    _
  $region11: #{gnn_forward.3} parent=0 // pred_check_branch
    %19 = sbr.rel (0) target = $region13
  $region12: #{gnn_forward.3} parent=0 // pred_region
    _
  $region13: #{gnn_forward.3} parent=0 // pred_fallthru
    _
  // Predicated region
  $region14: #{gnn_forward.3} parent=0 // pred_check
    _
  $region15: #{gnn_forward.3} parent=0 // pred_check_branch
    %21 = sbr.rel (0) target = $region17
  $region16: #{gnn_forward.3} parent=0 // pred_region
    _
  $region17: #{gnn_forward.3} parent=0 // pred_fallthru
    _
  // Predicated region
  $region18: #{gnn_forward.3} parent=0 // pred_check
    _
  $region19: #{gnn_forward.3} parent=0 // pred_check_branch
    %23 = sbr.rel (0) target = $region21
  $region20: #{gnn_forward.3} parent=0 // pred_region
    _
  $region21: #{gnn_forward.3} parent=0 // pred_fallthru
    _
  // Predicated region
  $region22: #{gnn_forward.3} parent=0 // pred_check
    _
  $region23: #{gnn_forward.3} parent=0 // pred_check_branch
    %25 = sbr.rel (0) target = $region25
  $region24: #{gnn_forward.3} parent=0 // pred_region
    _
  $region25: #{gnn_forward.3} parent=0 // pred_fallthru
    _
  // Predicated region
  $region26: #{gnn_forward.3} parent=0 // pred_check
    _
  $region27: #{gnn_forward.3} parent=0 // pred_check_branch
    %27 = sbr.rel (0) target = $region29
  $region28: #{gnn_forward.3} parent=0 // pred_region
    _
  $region29: #{gnn_forward.3} parent=0 // pred_fallthru
    _
  // Predicated region
  $region30: #{gnn_forward.3} parent=0 // pred_check
    _
  $region31: #{gnn_forward.3} parent=0 // pred_check_branch
    %29 = sbr.rel (0) target = $region33
  $region32: #{gnn_forward.3} parent=0 // pred_region
    _
  $region33: #{gnn_forward.3} parent=0 // pred_fallthru
    _
  // Predicated region
  $region34: #{gnn_forward.3} parent=0 // pred_check
    _
  $region35: #{gnn_forward.3} parent=0 // pred_check_branch
    %31 = sbr.rel (0) target = $region37
  $region36: #{gnn_forward.3} parent=0 // pred_region
    _
  $region37: #{gnn_forward.3} parent=0 // pred_fallthru
    _
  %p33 = scmp.eq.s32.totalorder 0, 0
  // Predicated region
  $region38: #{gnn_forward.3} parent=0 // pred_check
    %p34 = pneg %p33
  $region39: #{gnn_forward.3} parent=0 // pred_check_branch
    %36 = sbr.rel (%p34) target = $region41
  $region40: #{gnn_forward.3} parent=0 // pred_region
    %37 = vst [vmem:[#allocation2] sm:$0xff] 0.0
    %38 = vst [vmem:[#allocation2 + $0x8] sm:$0xff] 0.0
    %39 = vst [vmem:[#allocation2 + $0x10] sm:$0xff] 0.0
    %40 = vst [vmem:[#allocation2 + $0x18] sm:$0xff] 0.0
    %41 = vst [vmem:[#allocation2 + $0x20] sm:$0xff] 0.0
    %42 = vst [vmem:[#allocation2 + $0x28] sm:$0xff] 0.0
    %43 = vst [vmem:[#allocation2 + $0x30] sm:$0xff] 0.0
    %44 = vst [vmem:[#allocation2 + $0x38] sm:$0xff] 0.0
    %45 = vst [vmem:[#allocation2 + $0x40] sm:$0xff] 0.0
    %46 = vst [vmem:[#allocation2 + $0x48] sm:$0xff] 0.0
    %47 = vst [vmem:[#allocation2 + $0x50] sm:$0xff] 0.0
    %48 = vst [vmem:[#allocation2 + $0x58] sm:$0xff] 0.0
    %49 = vst [vmem:[#allocation2 + $0x60] sm:$0xff] 0.0
    %50 = vst [vmem:[#allocation2 + $0x68] sm:$0xff] 0.0
    %51 = vst [vmem:[#allocation2 + $0x70] sm:$0xff] 0.0
    %52 = vst [vmem:[#allocation2 + $0x78] sm:$0xff] 0.0
  $region41: #{gnn_forward.3} parent=0 // pred_fallthru
    _
  %v53 = vld [vmem:[#allocation2] sm:$0xff]
  %v54 = vld [vmem:[#allocation2 + $0x8] sm:$0xff]
  %v55 = vld [vmem:[#allocation2 + $0x10] sm:$0xff]
  %v56 = vld [vmem:[#allocation2 + $0x18] sm:$0xff]
  %v57 = vld [vmem:[#allocation2 + $0x20] sm:$0xff]
  %v58 = vld [vmem:[#allocation2 + $0x28] sm:$0xff]
  %v59 = vld [vmem:[#allocation2 + $0x30] sm:$0xff]
  %v60 = vld [vmem:[#allocation2 + $0x38] sm:$0xff]
  %v61 = vld [vmem:[#allocation2 + $0x40] sm:$0xff]
  %v62 = vld [vmem:[#allocation2 + $0x48] sm:$0xff]
  %v63 = vld [vmem:[#allocation2 + $0x50] sm:$0xff]
  %v64 = vld [vmem:[#allocation2 + $0x58] sm:$0xff]
  %v65 = vld [vmem:[#allocation2 + $0x60] sm:$0xff]
  %v66 = vld [vmem:[#allocation2 + $0x68] sm:$0xff]
  %v67 = vld [vmem:[#allocation2 + $0x70] sm:$0xff]
  %v68 = vld [vmem:[#allocation2 + $0x78] sm:$0xff]
  %v69 = vld [vmem:[%s0] sm:$0xf]
  %v70 = vld [vmem:[%s0 + $0x4] sm:$0xf]
  %v71 = vld [vmem:[%s0 + $0x8] sm:$0xf]
  %v72 = vld [vmem:[%s0 + $0xc] sm:$0xf]
  %v73 = vld [vmem:[%s0 + $0x10] sm:$0xf]
  %v74 = vld [vmem:[%s0 + $0x14] sm:$0xf]
  %v75 = vld [vmem:[%s0 + $0x18] sm:$0xf]
  %v76 = vld [vmem:[%s0 + $0x1c] sm:$0xf]
  %v77 = vld [vmem:[%s0 + $0x20] sm:$0xf]
  %v78 = vld [vmem:[%s0 + $0x24] sm:$0xf]
  %v79 = vld [vmem:[%s0 + $0x28] sm:$0xf]
  %v80 = vld [vmem:[%s0 + $0x2c] sm:$0xf]
  %v81 = vld [vmem:[%s0 + $0x30] sm:$0xf]
  %v82 = vld [vmem:[%s0 + $0x34] sm:$0xf]
  %v83 = vld [vmem:[%s0 + $0x38] sm:$0xf]
  %v84 = vld [vmem:[%s0 + $0x3c] sm:$0xf]
  %v85 = vld [vmem:[%s1] sm:$0xf]
  %v86 = vld [vmem:[%s1 + $0x4] sm:$0xf]
  %v87 = vld [vmem:[%s1 + $0x8] sm:$0xf]
  %v88 = vld [vmem:[%s1 + $0xc] sm:$0xf]
  %v89 = vld [vmem:[%s1 + $0x10] sm:$0xf]
  %v90 = vld [vmem:[%s1 + $0x14] sm:$0xf]
  %v91 = vld [vmem:[%s1 + $0x18] sm:$0xf]
  %v92 = vld [vmem:[%s1 + $0x1c] sm:$0xf]
  %v93 = vld [vmem:[%s1 + $0x20] sm:$0xf]
  %v94 = vld [vmem:[%s1 + $0x24] sm:$0xf]
  %v95 = vld [vmem:[%s1 + $0x28] sm:$0xf]
  %v96 = vld [vmem:[%s1 + $0x2c] sm:$0xf]
  %v97 = vld [vmem:[%s1 + $0x30] sm:$0xf]
  %v98 = vld [vmem:[%s1 + $0x34] sm:$0xf]
  %v99 = vld [vmem:[%s1 + $0x38] sm:$0xf]
  %v100 = vld [vmem:[%s1 + $0x3c] sm:$0xf]
  %v117 = vunpack.c.l.b16 %v69
  %v118 = vunpack.c.l.b16 %v70
  %v119 = vunpack.c.l.b16 %v71
  %v120 = vunpack.c.l.b16 %v72
  %v121 = vunpack.c.l.b16 %v73
  %v122 = vunpack.c.l.b16 %v74
  %v123 = vunpack.c.l.b16 %v75
  %v124 = vunpack.c.l.b16 %v76
  %v125 = vunpack.c.l.b16 %v77
  %v126 = vunpack.c.l.b16 %v78
  %v127 = vunpack.c.l.b16 %v79
  %v128 = vunpack.c.l.b16 %v80
  %v129 = vunpack.c.l.b16 %v81
  %v130 = vunpack.c.l.b16 %v82
  %v131 = vunpack.c.l.b16 %v83
  %v132 = vunpack.c.l.b16 %v84
  %v133 = vpack.c.b16 %v118, %v117
  %v134 = vpack.c.b16 %v120, %v119
  %v135 = vpack.c.b16 %v122, %v121
  %v136 = vpack.c.b16 %v124, %v123
  %v137 = vpack.c.b16 %v126, %v125
  %v138 = vpack.c.b16 %v128, %v127
  %v139 = vpack.c.b16 %v130, %v129
  %v140 = vpack.c.b16 %v132, %v131
  %v165 = vunpack.c.l.b16 %v85
  %v166 = vunpack.c.l.b16 %v86
  %v167 = vunpack.c.l.b16 %v87
  %v168 = vunpack.c.l.b16 %v88
  %v169 = vunpack.c.l.b16 %v89
  %v170 = vunpack.c.l.b16 %v90
  %v171 = vunpack.c.l.b16 %v91
  %v172 = vunpack.c.l.b16 %v92
  %v173 = vunpack.c.l.b16 %v93
  %v174 = vunpack.c.l.b16 %v94
  %v175 = vunpack.c.l.b16 %v95
  %v176 = vunpack.c.l.b16 %v96
  %v177 = vunpack.c.l.b16 %v97
  %v178 = vunpack.c.l.b16 %v98
  %v179 = vunpack.c.l.b16 %v99
  %v180 = vunpack.c.l.b16 %v100
  %v181 = vpack.c.b16 %v166, %v165
  %v182 = vpack.c.b16 %v168, %v167
  %v183 = vpack.c.b16 %v170, %v169
  %v184 = vpack.c.b16 %v172, %v171
  %v185 = vpack.c.b16 %v174, %v173
  %v186 = vpack.c.b16 %v176, %v175
  %v187 = vpack.c.b16 %v178, %v177
  %v188 = vpack.c.b16 %v180, %v179
  %197 = vmatprep.subr.bf16.mxu0 0
  %198 = vmatpush1.bf16.msra.mxu0 %v188
  %199 = vmatprep.subr.bf16.mxu0 0
  %200 = vmatpush1.bf16.msra.mxu0 %v187
  %201 = vmatprep.subr.bf16.mxu0 0
  %202 = vmatpush1.bf16.msra.mxu0 %v186
  %203 = vmatprep.subr.bf16.mxu0 0
  %204 = vmatpush1.bf16.msra.mxu0 %v185
  %205 = vmatprep.subr.bf16.mxu0 0
  %206 = vmatpush1.bf16.msra.mxu0 %v184
  %207 = vmatprep.subr.bf16.mxu0 0
  %208 = vmatpush1.bf16.msra.mxu0 %v183
  %209 = vmatprep.subr.bf16.mxu0 0
  %210 = vmatpush1.bf16.msra.mxu0 %v182
  %211 = vmatprep.subr.bf16.mxu0 0
  %212 = vmatpush1.bf16.msra.mxu0 %v181
  %213 = vmatprep.subr.bf16.mxu0 0
  %214 = vmatpush2.bf16.msra.mxu0 0
  %215 = vmatprep.subr.bf16.mxu0 0
  %216 = vmatpush2.bf16.msra.mxu0 0
  %217 = vmatprep.subr.bf16.mxu0 0
  %218 = vmatpush2.bf16.msra.mxu0 0
  %219 = vmatprep.subr.bf16.mxu0 0
  %220 = vmatpush2.bf16.msra.mxu0 0
  %221 = vmatprep.subr.bf16.mxu0 0
  %222 = vmatpush2.bf16.msra.mxu0 0
  %223 = vmatprep.subr.bf16.mxu0 0
  %224 = vmatpush2.bf16.msra.mxu0 0
  %225 = vmatprep.subr.bf16.mxu0 0
  %226 = vmatpush2.bf16.msra.mxu0 0
  %227 = vmatprep.subr.bf16.mxu0 0
  %228 = vmatpush2.bf16.msra.mxu0 0
  %229 = vmatprep.mubr.bf16.mxu0 0
  %230 = vmatmul.mubr.bf16.gmra.mxu0 %v133
  %v231 = vpop.f32.mrf.mxu0
  %v232 = vadd.f32 0.0, %v231
  %v233 = vpop.f32.mrf.mxu0
  %v234 = vpop.f32.mrf.mxu0
  %v235 = vadd.f32 0.0, %v234
  %v236 = vpop.f32.mrf.mxu0
  %237 = vmatprep.mubr.bf16.mxu0 0
  %238 = vmatmul.mubr.bf16.gmra.mxu0 %v134
  %v239 = vpop.f32.mrf.mxu0
  %v240 = vadd.f32 0.0, %v239
  %v241 = vpop.f32.mrf.mxu0
  %v242 = vpop.f32.mrf.mxu0
  %v243 = vadd.f32 0.0, %v242
  %v244 = vpop.f32.mrf.mxu0
  %245 = vmatprep.mubr.bf16.mxu0 0
  %246 = vmatmul.mubr.bf16.gmra.mxu0 %v135
  %v247 = vpop.f32.mrf.mxu0
  %v248 = vadd.f32 0.0, %v247
  %v249 = vpop.f32.mrf.mxu0
  %v250 = vpop.f32.mrf.mxu0
  %v251 = vadd.f32 0.0, %v250
  %v252 = vpop.f32.mrf.mxu0
  %253 = vmatprep.mubr.bf16.mxu0 0
  %254 = vmatmul.mubr.bf16.gmra.mxu0 %v136
  %v255 = vpop.f32.mrf.mxu0
  %v256 = vadd.f32 0.0, %v255
  %v257 = vpop.f32.mrf.mxu0
  %v258 = vpop.f32.mrf.mxu0
  %v259 = vadd.f32 0.0, %v258
  %v260 = vpop.f32.mrf.mxu0
  %261 = vmatprep.mubr.bf16.mxu0 0
  %262 = vmatmul.mubr.bf16.gmra.mxu0 %v137
  %v263 = vpop.f32.mrf.mxu0
  %v264 = vadd.f32 0.0, %v263
  %v265 = vpop.f32.mrf.mxu0
  %v266 = vpop.f32.mrf.mxu0
  %v267 = vadd.f32 0.0, %v266
  %v268 = vpop.f32.mrf.mxu0
  %269 = vmatprep.mubr.bf16.mxu0 0
  %270 = vmatmul.mubr.bf16.gmra.mxu0 %v138
  %v271 = vpop.f32.mrf.mxu0
  %v272 = vadd.f32 0.0, %v271
  %v273 = vpop.f32.mrf.mxu0
  %v274 = vpop.f32.mrf.mxu0
  %v275 = vadd.f32 0.0, %v274
  %v276 = vpop.f32.mrf.mxu0
  %277 = vmatprep.mubr.bf16.mxu0 0
  %278 = vmatmul.mubr.bf16.gmra.mxu0 %v139
  %v279 = vpop.f32.mrf.mxu0
  %v280 = vadd.f32 0.0, %v279
  %v281 = vpop.f32.mrf.mxu0
  %v282 = vpop.f32.mrf.mxu0
  %v283 = vadd.f32 0.0, %v282
  %v284 = vpop.f32.mrf.mxu0
  %285 = vmatprep.mubr.bf16.mxu0 0
  %286 = vmatmul.mubr.bf16.gmra.mxu0 %v140
  %v287 = vpop.f32.mrf.mxu0
  %v288 = vadd.f32 0.0, %v287
  %v289 = vpop.f32.mrf.mxu0
  %v290 = vpop.f32.mrf.mxu0
  %v291 = vadd.f32 0.0, %v290
  %v292 = vpop.f32.mrf.mxu0
  %293 = vdwg.mxu0
  %v294 = vadd.f32 %v53, %v232
  %v295 = vadd.f32 %v54, %v235
  %v296 = vadd.f32 %v55, %v240
  %v297 = vadd.f32 %v56, %v243
  %v298 = vadd.f32 %v57, %v248
  %v299 = vadd.f32 %v58, %v251
  %v300 = vadd.f32 %v59, %v256
  %v301 = vadd.f32 %v60, %v259
  %v302 = vadd.f32 %v61, %v264
  %v303 = vadd.f32 %v62, %v267
  %v304 = vadd.f32 %v63, %v272
  %v305 = vadd.f32 %v64, %v275
  %v306 = vadd.f32 %v65, %v280
  %v307 = vadd.f32 %v66, %v283
  %v308 = vadd.f32 %v67, %v288
  %v309 = vadd.f32 %v68, %v291
  %310 = vst [vmem:[#allocation2] sm:$0xff] %v294
  %311 = vst [vmem:[#allocation2 + $0x8] sm:$0xff] %v295
  %312 = vst [vmem:[#allocation2 + $0x10] sm:$0xff] %v296
  %313 = vst [vmem:[#allocation2 + $0x18] sm:$0xff] %v297
  %314 = vst [vmem:[#allocation2 + $0x20] sm:$0xff] %v298
  %315 = vst [vmem:[#allocation2 + $0x28] sm:$0xff] %v299
  %316 = vst [vmem:[#allocation2 + $0x30] sm:$0xff] %v300
  %317 = vst [vmem:[#allocation2 + $0x38] sm:$0xff] %v301
  %318 = vst [vmem:[#allocation2 + $0x40] sm:$0xff] %v302
  %319 = vst [vmem:[#allocation2 + $0x48] sm:$0xff] %v303
  %320 = vst [vmem:[#allocation2 + $0x50] sm:$0xff] %v304
  %321 = vst [vmem:[#allocation2 + $0x58] sm:$0xff] %v305
  %322 = vst [vmem:[#allocation2 + $0x60] sm:$0xff] %v306
  %323 = vst [vmem:[#allocation2 + $0x68] sm:$0xff] %v307
  %324 = vst [vmem:[#allocation2 + $0x70] sm:$0xff] %v308
  %325 = vst [vmem:[#allocation2 + $0x78] sm:$0xff] %v309
  // Predicated region
  $region42: #{gnn_forward.3} parent=0 // pred_check
    %p326 = pneg %p33
  $region43: #{gnn_forward.3} parent=0 // pred_check_branch
    %328 = sbr.rel (%p326) target = $region45
  $region44: #{gnn_forward.3} parent=0 // pred_region
    %v329 = vld [vmem:[#allocation2] sm:$0xff]
    %v330 = vld [vmem:[#allocation2 + $0x8] sm:$0xff]
    %v331 = vld [vmem:[#allocation2 + $0x10] sm:$0xff]
    %v332 = vld [vmem:[#allocation2 + $0x18] sm:$0xff]
    %v333 = vld [vmem:[#allocation2 + $0x20] sm:$0xff]
    %v334 = vld [vmem:[#allocation2 + $0x28] sm:$0xff]
    %v335 = vld [vmem:[#allocation2 + $0x30] sm:$0xff]
    %v336 = vld [vmem:[#allocation2 + $0x38] sm:$0xff]
    %v337 = vld [vmem:[#allocation2 + $0x40] sm:$0xff]
    %v338 = vld [vmem:[#allocation2 + $0x48] sm:$0xff]
    %v339 = vld [vmem:[#allocation2 + $0x50] sm:$0xff]
    %v340 = vld [vmem:[#allocation2 + $0x58] sm:$0xff]
    %v341 = vld [vmem:[#allocation2 + $0x60] sm:$0xff]
    %v342 = vld [vmem:[#allocation2 + $0x68] sm:$0xff]
    %v343 = vld [vmem:[#allocation2 + $0x70] sm:$0xff]
    %v344 = vld [vmem:[#allocation2 + $0x78] sm:$0xff]
    %v345 = vld [vmem:[%s3] sm:$0xff]
    %v346 = vld [vmem:[%s3 + $0x8] sm:$0xff]
    %v347 = vld [vmem:[%s3 + $0x10] sm:$0xff]
    %v348 = vld [vmem:[%s3 + $0x18] sm:$0xff]
    %v349 = vld [vmem:[%s3 + $0x20] sm:$0xff]
    %v350 = vld [vmem:[%s3 + $0x28] sm:$0xff]
    %v351 = vld [vmem:[%s3 + $0x30] sm:$0xff]
    %v352 = vld [vmem:[%s3 + $0x38] sm:$0xff]
    %v353 = vld [vmem:[%s3 + $0x40] sm:$0xff]
    %v354 = vld [vmem:[%s3 + $0x48] sm:$0xff]
    %v355 = vld [vmem:[%s3 + $0x50] sm:$0xff]
    %v356 = vld [vmem:[%s3 + $0x58] sm:$0xff]
    %v357 = vld [vmem:[%s3 + $0x60] sm:$0xff]
    %v358 = vld [vmem:[%s3 + $0x68] sm:$0xff]
    %v359 = vld [vmem:[%s3 + $0x70] sm:$0xff]
    %v360 = vld [vmem:[%s3 + $0x78] sm:$0xff]
    %362 = vset.pattern.permute.xlu0 0
    %363 = vperm.xlu0 %362, %v345
    %v364 = vpop.permute.xlu0 %363
    %367 = vset.pattern.permute.xlu0 0
    %368 = vperm.xlu0 %367, %v346
    %v369 = vpop.permute.xlu0 %368
    %372 = vset.pattern.permute.xlu0 0
    %373 = vperm.xlu0 %372, %v347
    %v374 = vpop.permute.xlu0 %373
    %377 = vset.pattern.permute.xlu0 0
    %378 = vperm.xlu0 %377, %v348
    %v379 = vpop.permute.xlu0 %378
    %382 = vset.pattern.permute.xlu0 0
    %383 = vperm.xlu0 %382, %v349
    %v384 = vpop.permute.xlu0 %383
    %387 = vset.pattern.permute.xlu0 0
    %388 = vperm.xlu0 %387, %v350
    %v389 = vpop.permute.xlu0 %388
    %392 = vset.pattern.permute.xlu0 0
    %393 = vperm.xlu0 %392, %v351
    %v394 = vpop.permute.xlu0 %393
    %397 = vset.pattern.permute.xlu0 0
    %398 = vperm.xlu0 %397, %v352
    %v399 = vpop.permute.xlu0 %398
    %402 = vset.pattern.permute.xlu0 0
    %403 = vperm.xlu0 %402, %v353
    %v404 = vpop.permute.xlu0 %403
    %407 = vset.pattern.permute.xlu0 0
    %408 = vperm.xlu0 %407, %v354
    %v409 = vpop.permute.xlu0 %408
    %412 = vset.pattern.permute.xlu0 0
    %413 = vperm.xlu0 %412, %v355
    %v414 = vpop.permute.xlu0 %413
    %417 = vset.pattern.permute.xlu0 0
    %418 = vperm.xlu0 %417, %v356
    %v419 = vpop.permute.xlu0 %418
    %422 = vset.pattern.permute.xlu0 0
    %423 = vperm.xlu0 %422, %v357
    %v424 = vpop.permute.xlu0 %423
    %427 = vset.pattern.permute.xlu0 0
    %428 = vperm.xlu0 %427, %v358
    %v429 = vpop.permute.xlu0 %428
    %432 = vset.pattern.permute.xlu0 0
    %433 = vperm.xlu0 %432, %v359
    %v434 = vpop.permute.xlu0 %433
    %437 = vset.pattern.permute.xlu0 0
    %438 = vperm.xlu0 %437, %v360
    %v439 = vpop.permute.xlu0 %438
    %v441 = vmul.f32 %v329, %v364
    %v442 = vmul.f32 %v330, %v369
    %v443 = vmul.f32 %v331, %v374
    %v444 = vmul.f32 %v332, %v379
    %v445 = vmul.f32 %v333, %v384
    %v446 = vmul.f32 %v334, %v389
    %v447 = vmul.f32 %v335, %v394
    %v448 = vmul.f32 %v336, %v399
    %v449 = vmul.f32 %v337, %v404
    %v450 = vmul.f32 %v338, %v409
    %v451 = vmul.f32 %v339, %v414
    %v452 = vmul.f32 %v340, %v419
    %v453 = vmul.f32 %v341, %v424
    %v454 = vmul.f32 %v342, %v429
    %v455 = vmul.f32 %v343, %v434
    %v456 = vmul.f32 %v344, %v439
    %v457 = vpack.c.bf16 %v442, %v441
    %v458 = vpack.c.bf16 %v444, %v443
    %v459 = vpack.c.bf16 %v446, %v445
    %v460 = vpack.c.bf16 %v448, %v447
    %v461 = vpack.c.bf16 %v450, %v449
    %v462 = vpack.c.bf16 %v452, %v451
    %v463 = vpack.c.bf16 %v454, %v453
    %v464 = vpack.c.bf16 %v456, %v455
    %v465 = vld [vmem:[%s4] sm:$0xf]
    %v466 = vld [vmem:[%s4 + $0x4] sm:$0xf]
    %v467 = vld [vmem:[%s4 + $0x8] sm:$0xf]
    %v468 = vld [vmem:[%s4 + $0xc] sm:$0xf]
    %v469 = vld [vmem:[%s4 + $0x10] sm:$0xf]
    %v470 = vld [vmem:[%s4 + $0x14] sm:$0xf]
    %v471 = vld [vmem:[%s4 + $0x18] sm:$0xf]
    %v472 = vld [vmem:[%s4 + $0x1c] sm:$0xf]
    %v473 = vld [vmem:[%s4 + $0x20] sm:$0xf]
    %v474 = vld [vmem:[%s4 + $0x24] sm:$0xf]
    %v475 = vld [vmem:[%s4 + $0x28] sm:$0xf]
    %v476 = vld [vmem:[%s4 + $0x2c] sm:$0xf]
    %v477 = vld [vmem:[%s4 + $0x30] sm:$0xf]
    %v478 = vld [vmem:[%s4 + $0x34] sm:$0xf]
    %v479 = vld [vmem:[%s4 + $0x38] sm:$0xf]
    %v480 = vld [vmem:[%s4 + $0x3c] sm:$0xf]
    %v481 = vld [vmem:[%s2] sm:$0xf]
    %v482 = vld [vmem:[%s2 + $0x4] sm:$0xf]
    %v483 = vld [vmem:[%s2 + $0x8] sm:$0xf]
    %v484 = vld [vmem:[%s2 + $0xc] sm:$0xf]
    %v485 = vld [vmem:[%s2 + $0x10] sm:$0xf]
    %v486 = vld [vmem:[%s2 + $0x14] sm:$0xf]
    %v487 = vld [vmem:[%s2 + $0x18] sm:$0xf]
    %v488 = vld [vmem:[%s2 + $0x1c] sm:$0xf]
    %v489 = vld [vmem:[%s2 + $0x20] sm:$0xf]
    %v490 = vld [vmem:[%s2 + $0x24] sm:$0xf]
    %v491 = vld [vmem:[%s2 + $0x28] sm:$0xf]
    %v492 = vld [vmem:[%s2 + $0x2c] sm:$0xf]
    %v493 = vld [vmem:[%s2 + $0x30] sm:$0xf]
    %v494 = vld [vmem:[%s2 + $0x34] sm:$0xf]
    %v495 = vld [vmem:[%s2 + $0x38] sm:$0xf]
    %v496 = vld [vmem:[%s2 + $0x3c] sm:$0xf]
    %v497 = vld [vmem:[%s5] sm:$0xf]
    %v498 = vld [vmem:[%s5 + $0x4] sm:$0xf]
    %v499 = vld [vmem:[%s5 + $0x8] sm:$0xf]
    %v500 = vld [vmem:[%s5 + $0xc] sm:$0xf]
    %v501 = vld [vmem:[%s5 + $0x10] sm:$0xf]
    %v502 = vld [vmem:[%s5 + $0x14] sm:$0xf]
    %v503 = vld [vmem:[%s5 + $0x18] sm:$0xf]
    %v504 = vld [vmem:[%s5 + $0x1c] sm:$0xf]
    %v505 = vld [vmem:[%s5 + $0x20] sm:$0xf]
    %v506 = vld [vmem:[%s5 + $0x24] sm:$0xf]
    %v507 = vld [vmem:[%s5 + $0x28] sm:$0xf]
    %v508 = vld [vmem:[%s5 + $0x2c] sm:$0xf]
    %v509 = vld [vmem:[%s5 + $0x30] sm:$0xf]
    %v510 = vld [vmem:[%s5 + $0x34] sm:$0xf]
    %v511 = vld [vmem:[%s5 + $0x38] sm:$0xf]
    %v512 = vld [vmem:[%s5 + $0x3c] sm:$0xf]
    %v529 = vunpack.c.l.b16 %v481
    %v530 = vunpack.c.l.b16 %v482
    %v531 = vunpack.c.l.b16 %v483
    %v532 = vunpack.c.l.b16 %v484
    %v533 = vunpack.c.l.b16 %v485
    %v534 = vunpack.c.l.b16 %v486
    %v535 = vunpack.c.l.b16 %v487
    %v536 = vunpack.c.l.b16 %v488
    %v537 = vunpack.c.l.b16 %v489
    %v538 = vunpack.c.l.b16 %v490
    %v539 = vunpack.c.l.b16 %v491
    %v540 = vunpack.c.l.b16 %v492
    %v541 = vunpack.c.l.b16 %v493
    %v542 = vunpack.c.l.b16 %v494
    %v543 = vunpack.c.l.b16 %v495
    %v544 = vunpack.c.l.b16 %v496
    %v545 = vpack.c.b16 %v530, %v529
    %v546 = vpack.c.b16 %v532, %v531
    %v547 = vpack.c.b16 %v534, %v533
    %v548 = vpack.c.b16 %v536, %v535
    %v549 = vpack.c.b16 %v538, %v537
    %v550 = vpack.c.b16 %v540, %v539
    %v551 = vpack.c.b16 %v542, %v541
    %v552 = vpack.c.b16 %v544, %v543
    %v577 = vunpack.c.l.b16 %v497
    %v578 = vunpack.c.l.b16 %v498
    %v579 = vunpack.c.l.b16 %v499
    %v580 = vunpack.c.l.b16 %v500
    %v581 = vunpack.c.l.b16 %v501
    %v582 = vunpack.c.l.b16 %v502
    %v583 = vunpack.c.l.b16 %v503
    %v584 = vunpack.c.l.b16 %v504
    %v585 = vunpack.c.l.b16 %v505
    %v586 = vunpack.c.l.b16 %v506
    %v587 = vunpack.c.l.b16 %v507
    %v588 = vunpack.c.l.b16 %v508
    %v589 = vunpack.c.l.b16 %v509
    %v590 = vunpack.c.l.b16 %v510
    %v591 = vunpack.c.l.b16 %v511
    %v592 = vunpack.c.l.b16 %v512
    %v593 = vpack.c.b16 %v578, %v577
    %v594 = vpack.c.b16 %v580, %v579
    %v595 = vpack.c.b16 %v582, %v581
    %v596 = vpack.c.b16 %v584, %v583
    %v597 = vpack.c.b16 %v586, %v585
    %v598 = vpack.c.b16 %v588, %v587
    %v599 = vpack.c.b16 %v590, %v589
    %v600 = vpack.c.b16 %v592, %v591
    %609 = vmatprep.subr.bf16.mxu0 0
    %610 = vmatpush1.bf16.msra.mxu0 %v600
    %611 = vmatprep.subr.bf16.mxu0 0
    %612 = vmatpush1.bf16.msra.mxu0 %v599
    %613 = vmatprep.subr.bf16.mxu0 0
    %614 = vmatpush1.bf16.msra.mxu0 %v598
    %615 = vmatprep.subr.bf16.mxu0 0
    %616 = vmatpush1.bf16.msra.mxu0 %v597
    %617 = vmatprep.subr.bf16.mxu0 0
    %618 = vmatpush1.bf16.msra.mxu0 %v596
    %619 = vmatprep.subr.bf16.mxu0 0
    %620 = vmatpush1.bf16.msra.mxu0 %v595
    %621 = vmatprep.subr.bf16.mxu0 0
    %622 = vmatpush1.bf16.msra.mxu0 %v594
    %623 = vmatprep.subr.bf16.mxu0 0
    %624 = vmatpush1.bf16.msra.mxu0 %v593
    %625 = vmatprep.subr.bf16.mxu0 0
    %626 = vmatpush2.bf16.msra.mxu0 0
    %627 = vmatprep.subr.bf16.mxu0 0
    %628 = vmatpush2.bf16.msra.mxu0 0
    %629 = vmatprep.subr.bf16.mxu0 0
    %630 = vmatpush2.bf16.msra.mxu0 0
    %631 = vmatprep.subr.bf16.mxu0 0
    %632 = vmatpush2.bf16.msra.mxu0 0
    %633 = vmatprep.subr.bf16.mxu0 0
    %634 = vmatpush2.bf16.msra.mxu0 0
    %635 = vmatprep.subr.bf16.mxu0 0
    %636 = vmatpush2.bf16.msra.mxu0 0
    %637 = vmatprep.subr.bf16.mxu0 0
    %638 = vmatpush2.bf16.msra.mxu0 0
    %639 = vmatprep.subr.bf16.mxu0 0
    %640 = vmatpush2.bf16.msra.mxu0 0
    %641 = vmatprep.mubr.bf16.mxu0 0
    %642 = vmatmul.mubr.bf16.gmra.mxu0 %v545
    %v643 = vpop.f32.mrf.mxu0
    %v644 = vadd.f32 0.0, %v643
    %v645 = vpop.f32.mrf.mxu0
    %v646 = vpop.f32.mrf.mxu0
    %v647 = vadd.f32 0.0, %v646
    %v648 = vpop.f32.mrf.mxu0
    %649 = vmatprep.mubr.bf16.mxu0 0
    %650 = vmatmul.mubr.bf16.gmra.mxu0 %v546
    %v651 = vpop.f32.mrf.mxu0
    %v652 = vadd.f32 0.0, %v651
    %v653 = vpop.f32.mrf.mxu0
    %v654 = vpop.f32.mrf.mxu0
    %v655 = vadd.f32 0.0, %v654
    %v656 = vpop.f32.mrf.mxu0
    %657 = vmatprep.mubr.bf16.mxu0 0
    %658 = vmatmul.mubr.bf16.gmra.mxu0 %v547
    %v659 = vpop.f32.mrf.mxu0
    %v660 = vadd.f32 0.0, %v659
    %v661 = vpop.f32.mrf.mxu0
    %v662 = vpop.f32.mrf.mxu0
    %v663 = vadd.f32 0.0, %v662
    %v664 = vpop.f32.mrf.mxu0
    %665 = vmatprep.mubr.bf16.mxu0 0
    %666 = vmatmul.mubr.bf16.gmra.mxu0 %v548
    %v667 = vpop.f32.mrf.mxu0
    %v668 = vadd.f32 0.0, %v667
    %v669 = vpop.f32.mrf.mxu0
    %v670 = vpop.f32.mrf.mxu0
    %v671 = vadd.f32 0.0, %v670
    %v672 = vpop.f32.mrf.mxu0
    %673 = vmatprep.mubr.bf16.mxu0 0
    %674 = vmatmul.mubr.bf16.gmra.mxu0 %v549
    %v675 = vpop.f32.mrf.mxu0
    %v676 = vadd.f32 0.0, %v675
    %v677 = vpop.f32.mrf.mxu0
    %v678 = vpop.f32.mrf.mxu0
    %v679 = vadd.f32 0.0, %v678
    %v680 = vpop.f32.mrf.mxu0
    %681 = vmatprep.mubr.bf16.mxu0 0
    %682 = vmatmul.mubr.bf16.gmra.mxu0 %v550
    %v683 = vpop.f32.mrf.mxu0
    %v684 = vadd.f32 0.0, %v683
    %v685 = vpop.f32.mrf.mxu0
    %v686 = vpop.f32.mrf.mxu0
    %v687 = vadd.f32 0.0, %v686
    %v688 = vpop.f32.mrf.mxu0
    %689 = vmatprep.mubr.bf16.mxu0 0
    %690 = vmatmul.mubr.bf16.gmra.mxu0 %v551
    %v691 = vpop.f32.mrf.mxu0
    %v692 = vadd.f32 0.0, %v691
    %v693 = vpop.f32.mrf.mxu0
    %v694 = vpop.f32.mrf.mxu0
    %v695 = vadd.f32 0.0, %v694
    %v696 = vpop.f32.mrf.mxu0
    %697 = vmatprep.mubr.bf16.mxu0 0
    %698 = vmatmul.mubr.bf16.gmra.mxu0 %v552
    %v699 = vpop.f32.mrf.mxu0
    %v700 = vadd.f32 0.0, %v699
    %v701 = vpop.f32.mrf.mxu0
    %v702 = vpop.f32.mrf.mxu0
    %v703 = vadd.f32 0.0, %v702
    %v704 = vpop.f32.mrf.mxu0
    %705 = vdwg.mxu0
    %v722 = vunpack.c.l.b16 %v465
    %v723 = vunpack.c.l.b16 %v466
    %v724 = vunpack.c.l.b16 %v467
    %v725 = vunpack.c.l.b16 %v468
    %v726 = vunpack.c.l.b16 %v469
    %v727 = vunpack.c.l.b16 %v470
    %v728 = vunpack.c.l.b16 %v471
    %v729 = vunpack.c.l.b16 %v472
    %v730 = vunpack.c.l.b16 %v473
    %v731 = vunpack.c.l.b16 %v474
    %v732 = vunpack.c.l.b16 %v475
    %v733 = vunpack.c.l.b16 %v476
    %v734 = vunpack.c.l.b16 %v477
    %v735 = vunpack.c.l.b16 %v478
    %v736 = vunpack.c.l.b16 %v479
    %v737 = vunpack.c.l.b16 %v480
    %v738 = vpack.c.b16 %v723, %v722
    %v739 = vpack.c.b16 %v725, %v724
    %v740 = vpack.c.b16 %v727, %v726
    %v741 = vpack.c.b16 %v729, %v728
    %v742 = vpack.c.b16 %v731, %v730
    %v743 = vpack.c.b16 %v733, %v732
    %v744 = vpack.c.b16 %v735, %v734
    %v745 = vpack.c.b16 %v737, %v736
    %754 = vmatprep.subr.bf16.mxu0 0
    %755 = vmatpush1.bf16.msra.mxu0 %v745
    %756 = vmatprep.subr.bf16.mxu0 0
    %757 = vmatpush1.bf16.msra.mxu0 %v744
    %758 = vmatprep.subr.bf16.mxu0 0
    %759 = vmatpush1.bf16.msra.mxu0 %v743
    %760 = vmatprep.subr.bf16.mxu0 0
    %761 = vmatpush1.bf16.msra.mxu0 %v742
    %762 = vmatprep.subr.bf16.mxu0 0
    %763 = vmatpush1.bf16.msra.mxu0 %v741
    %764 = vmatprep.subr.bf16.mxu0 0
    %765 = vmatpush1.bf16.msra.mxu0 %v740
    %766 = vmatprep.subr.bf16.mxu0 0
    %767 = vmatpush1.bf16.msra.mxu0 %v739
    %768 = vmatprep.subr.bf16.mxu0 0
    %769 = vmatpush1.bf16.msra.mxu0 %v738
    %770 = vmatprep.subr.bf16.mxu0 0
    %771 = vmatpush2.bf16.msra.mxu0 0
    %772 = vmatprep.subr.bf16.mxu0 0
    %773 = vmatpush2.bf16.msra.mxu0 0
    %774 = vmatprep.subr.bf16.mxu0 0
    %775 = vmatpush2.bf16.msra.mxu0 0
    %776 = vmatprep.subr.bf16.mxu0 0
    %777 = vmatpush2.bf16.msra.mxu0 0
    %778 = vmatprep.subr.bf16.mxu0 0
    %779 = vmatpush2.bf16.msra.mxu0 0
    %780 = vmatprep.subr.bf16.mxu0 0
    %781 = vmatpush2.bf16.msra.mxu0 0
    %782 = vmatprep.subr.bf16.mxu0 0
    %783 = vmatpush2.bf16.msra.mxu0 0
    %784 = vmatprep.subr.bf16.mxu0 0
    %785 = vmatpush2.bf16.msra.mxu0 0
    %786 = vmatprep.mubr.bf16.mxu0 0
    %787 = vmatmul.mubr.bf16.gmra.mxu0 %v457
    %v788 = vpop.f32.mrf.mxu0
    %v789 = vadd.f32 %v644, %v788
    %v790 = vpop.f32.mrf.mxu0
    %v791 = vpop.f32.mrf.mxu0
    %v792 = vadd.f32 %v647, %v791
    %v793 = vpop.f32.mrf.mxu0
    %794 = vmatprep.mubr.bf16.mxu0 0
    %795 = vmatmul.mubr.bf16.gmra.mxu0 %v458
    %v796 = vpop.f32.mrf.mxu0
    %v797 = vadd.f32 %v652, %v796
    %v798 = vpop.f32.mrf.mxu0
    %v799 = vpop.f32.mrf.mxu0
    %v800 = vadd.f32 %v655, %v799
    %v801 = vpop.f32.mrf.mxu0
    %802 = vmatprep.mubr.bf16.mxu0 0
    %803 = vmatmul.mubr.bf16.gmra.mxu0 %v459
    %v804 = vpop.f32.mrf.mxu0
    %v805 = vadd.f32 %v660, %v804
    %v806 = vpop.f32.mrf.mxu0
    %v807 = vpop.f32.mrf.mxu0
    %v808 = vadd.f32 %v663, %v807
    %v809 = vpop.f32.mrf.mxu0
    %810 = vmatprep.mubr.bf16.mxu0 0
    %811 = vmatmul.mubr.bf16.gmra.mxu0 %v460
    %v812 = vpop.f32.mrf.mxu0
    %v813 = vadd.f32 %v668, %v812
    %v814 = vpop.f32.mrf.mxu0
    %v815 = vpop.f32.mrf.mxu0
    %v816 = vadd.f32 %v671, %v815
    %v817 = vpop.f32.mrf.mxu0
    %818 = vmatprep.mubr.bf16.mxu0 0
    %819 = vmatmul.mubr.bf16.gmra.mxu0 %v461
    %v820 = vpop.f32.mrf.mxu0
    %v821 = vadd.f32 %v676, %v820
    %v822 = vpop.f32.mrf.mxu0
    %v823 = vpop.f32.mrf.mxu0
    %v824 = vadd.f32 %v679, %v823
    %v825 = vpop.f32.mrf.mxu0
    %826 = vmatprep.mubr.bf16.mxu0 0
    %827 = vmatmul.mubr.bf16.gmra.mxu0 %v462
    %v828 = vpop.f32.mrf.mxu0
    %v829 = vadd.f32 %v684, %v828
    %v830 = vpop.f32.mrf.mxu0
    %v831 = vpop.f32.mrf.mxu0
    %v832 = vadd.f32 %v687, %v831
    %v833 = vpop.f32.mrf.mxu0
    %834 = vmatprep.mubr.bf16.mxu0 0
    %835 = vmatmul.mubr.bf16.gmra.mxu0 %v463
    %v836 = vpop.f32.mrf.mxu0
    %v837 = vadd.f32 %v692, %v836
    %v838 = vpop.f32.mrf.mxu0
    %v839 = vpop.f32.mrf.mxu0
    %v840 = vadd.f32 %v695, %v839
    %v841 = vpop.f32.mrf.mxu0
    %842 = vmatprep.mubr.bf16.mxu0 0
    %843 = vmatmul.mubr.bf16.gmra.mxu0 %v464
    %v844 = vpop.f32.mrf.mxu0
    %v845 = vadd.f32 %v700, %v844
    %v846 = vpop.f32.mrf.mxu0
    %v847 = vpop.f32.mrf.mxu0
    %v848 = vadd.f32 %v703, %v847
    %v849 = vpop.f32.mrf.mxu0
    %850 = vdwg.mxu0
    %v851 = vld [vmem:[%s6] sm:$0x1]
    %v853 = vlaneseq
    %v854 = vshrl.u32 %v853, 7
    %v855 = vsub.s32 0, %v854
    %v856 = vrot.slane %v851, %v855
    %v858 = vadd.f32 %v789, %v856
    %v859 = vadd.f32 %v792, %v856
    %v860 = vadd.f32 %v797, %v856
    %v861 = vadd.f32 %v800, %v856
    %v862 = vadd.f32 %v805, %v856
    %v863 = vadd.f32 %v808, %v856
    %v864 = vadd.f32 %v813, %v856
    %v865 = vadd.f32 %v816, %v856
    %v866 = vadd.f32 %v821, %v856
    %v867 = vadd.f32 %v824, %v856
    %v868 = vadd.f32 %v829, %v856
    %v869 = vadd.f32 %v832, %v856
    %v870 = vadd.f32 %v837, %v856
    %v871 = vadd.f32 %v840, %v856
    %v872 = vadd.f32 %v845, %v856
    %v873 = vadd.f32 %v848, %v856
    %v874 = vmax.f32 %v858, 0.0
    %v875 = vmax.f32 %v859, 0.0
    %v876 = vmax.f32 %v860, 0.0
    %v877 = vmax.f32 %v861, 0.0
    %v878 = vmax.f32 %v862, 0.0
    %v879 = vmax.f32 %v863, 0.0
    %v880 = vmax.f32 %v864, 0.0
    %v881 = vmax.f32 %v865, 0.0
    %v882 = vmax.f32 %v866, 0.0
    %v883 = vmax.f32 %v867, 0.0
    %v884 = vmax.f32 %v868, 0.0
    %v885 = vmax.f32 %v869, 0.0
    %v886 = vmax.f32 %v870, 0.0
    %v887 = vmax.f32 %v871, 0.0
    %v888 = vmax.f32 %v872, 0.0
    %v889 = vmax.f32 %v873, 0.0
    %v890 = vpack.c.bf16 %v875, %v874
    %v891 = vpack.c.bf16 %v877, %v876
    %v892 = vpack.c.bf16 %v879, %v878
    %v893 = vpack.c.bf16 %v881, %v880
    %v894 = vpack.c.bf16 %v883, %v882
    %v895 = vpack.c.bf16 %v885, %v884
    %v896 = vpack.c.bf16 %v887, %v886
    %v897 = vpack.c.bf16 %v889, %v888
    %v898 = vld [vmem:[%s7] sm:$0xf]
    %v899 = vld [vmem:[%s7 + $0x4] sm:$0xf]
    %v900 = vld [vmem:[%s7 + $0x8] sm:$0xf]
    %v901 = vld [vmem:[%s7 + $0xc] sm:$0xf]
    %v902 = vld [vmem:[%s7 + $0x10] sm:$0xf]
    %v903 = vld [vmem:[%s7 + $0x14] sm:$0xf]
    %v904 = vld [vmem:[%s7 + $0x18] sm:$0xf]
    %v905 = vld [vmem:[%s7 + $0x1c] sm:$0xf]
    %v906 = vld [vmem:[%s7 + $0x20] sm:$0xf]
    %v907 = vld [vmem:[%s7 + $0x24] sm:$0xf]
    %v908 = vld [vmem:[%s7 + $0x28] sm:$0xf]
    %v909 = vld [vmem:[%s7 + $0x2c] sm:$0xf]
    %v910 = vld [vmem:[%s7 + $0x30] sm:$0xf]
    %v911 = vld [vmem:[%s7 + $0x34] sm:$0xf]
    %v912 = vld [vmem:[%s7 + $0x38] sm:$0xf]
    %v913 = vld [vmem:[%s7 + $0x3c] sm:$0xf]
    %v914 = vld [vmem:[%s8] sm:$0x1]
    %v916 = vlaneseq
    %v917 = vshrl.u32 %v916, 7
    %v918 = vsub.s32 0, %v917
    %v919 = vrot.slane %v914, %v918
    %v937 = vunpack.c.l.b16 %v898
    %v938 = vunpack.c.l.b16 %v899
    %v939 = vunpack.c.l.b16 %v900
    %v940 = vunpack.c.l.b16 %v901
    %v941 = vunpack.c.l.b16 %v902
    %v942 = vunpack.c.l.b16 %v903
    %v943 = vunpack.c.l.b16 %v904
    %v944 = vunpack.c.l.b16 %v905
    %v945 = vunpack.c.l.b16 %v906
    %v946 = vunpack.c.l.b16 %v907
    %v947 = vunpack.c.l.b16 %v908
    %v948 = vunpack.c.l.b16 %v909
    %v949 = vunpack.c.l.b16 %v910
    %v950 = vunpack.c.l.b16 %v911
    %v951 = vunpack.c.l.b16 %v912
    %v952 = vunpack.c.l.b16 %v913
    %v953 = vpack.c.b16 %v938, %v937
    %v954 = vpack.c.b16 %v940, %v939
    %v955 = vpack.c.b16 %v942, %v941
    %v956 = vpack.c.b16 %v944, %v943
    %v957 = vpack.c.b16 %v946, %v945
    %v958 = vpack.c.b16 %v948, %v947
    %v959 = vpack.c.b16 %v950, %v949
    %v960 = vpack.c.b16 %v952, %v951
    %969 = vmatprep.subr.bf16.mxu0 0
    %970 = vmatpush1.bf16.msra.mxu0 %v960
    %971 = vmatprep.subr.bf16.mxu0 0
    %972 = vmatpush1.bf16.msra.mxu0 %v959
    %973 = vmatprep.subr.bf16.mxu0 0
    %974 = vmatpush1.bf16.msra.mxu0 %v958
    %975 = vmatprep.subr.bf16.mxu0 0
    %976 = vmatpush1.bf16.msra.mxu0 %v957
    %977 = vmatprep.subr.bf16.mxu0 0
    %978 = vmatpush1.bf16.msra.mxu0 %v956
    %979 = vmatprep.subr.bf16.mxu0 0
    %980 = vmatpush1.bf16.msra.mxu0 %v955
    %981 = vmatprep.subr.bf16.mxu0 0
    %982 = vmatpush1.bf16.msra.mxu0 %v954
    %983 = vmatprep.subr.bf16.mxu0 0
    %984 = vmatpush1.bf16.msra.mxu0 %v953
    %985 = vmatprep.subr.bf16.mxu0 0
    %986 = vmatpush2.bf16.msra.mxu0 0
    %987 = vmatprep.subr.bf16.mxu0 0
    %988 = vmatpush2.bf16.msra.mxu0 0
    %989 = vmatprep.subr.bf16.mxu0 0
    %990 = vmatpush2.bf16.msra.mxu0 0
    %991 = vmatprep.subr.bf16.mxu0 0
    %992 = vmatpush2.bf16.msra.mxu0 0
    %993 = vmatprep.subr.bf16.mxu0 0
    %994 = vmatpush2.bf16.msra.mxu0 0
    %995 = vmatprep.subr.bf16.mxu0 0
    %996 = vmatpush2.bf16.msra.mxu0 0
    %997 = vmatprep.subr.bf16.mxu0 0
    %998 = vmatpush2.bf16.msra.mxu0 0
    %999 = vmatprep.subr.bf16.mxu0 0
    %1000 = vmatpush2.bf16.msra.mxu0 0
    %1001 = vmatprep.mubr.bf16.mxu0 0
    %1002 = vmatmul.mubr.bf16.gmra.mxu0 %v890
    %v1003 = vpop.f32.mrf.mxu0
    %v1004 = vadd.f32 %v919, %v1003
    %v1005 = vpop.f32.mrf.mxu0
    %v1006 = vpop.f32.mrf.mxu0
    %v1007 = vadd.f32 %v919, %v1006
    %v1008 = vpop.f32.mrf.mxu0
    %1009 = vmatprep.mubr.bf16.mxu0 0
    %1010 = vmatmul.mubr.bf16.gmra.mxu0 %v891
    %v1011 = vpop.f32.mrf.mxu0
    %v1012 = vadd.f32 %v919, %v1011
    %v1013 = vpop.f32.mrf.mxu0
    %v1014 = vpop.f32.mrf.mxu0
    %v1015 = vadd.f32 %v919, %v1014
    %v1016 = vpop.f32.mrf.mxu0
    %1017 = vmatprep.mubr.bf16.mxu0 0
    %1018 = vmatmul.mubr.bf16.gmra.mxu0 %v892
    %v1019 = vpop.f32.mrf.mxu0
    %v1020 = vadd.f32 %v919, %v1019
    %v1021 = vpop.f32.mrf.mxu0
    %v1022 = vpop.f32.mrf.mxu0
    %v1023 = vadd.f32 %v919, %v1022
    %v1024 = vpop.f32.mrf.mxu0
    %1025 = vmatprep.mubr.bf16.mxu0 0
    %1026 = vmatmul.mubr.bf16.gmra.mxu0 %v893
    %v1027 = vpop.f32.mrf.mxu0
    %v1028 = vadd.f32 %v919, %v1027
    %v1029 = vpop.f32.mrf.mxu0
    %v1030 = vpop.f32.mrf.mxu0
    %v1031 = vadd.f32 %v919, %v1030
    %v1032 = vpop.f32.mrf.mxu0
    %1033 = vmatprep.mubr.bf16.mxu0 0
    %1034 = vmatmul.mubr.bf16.gmra.mxu0 %v894
    %v1035 = vpop.f32.mrf.mxu0
    %v1036 = vadd.f32 %v919, %v1035
    %v1037 = vpop.f32.mrf.mxu0
    %v1038 = vpop.f32.mrf.mxu0
    %v1039 = vadd.f32 %v919, %v1038
    %v1040 = vpop.f32.mrf.mxu0
    %1041 = vmatprep.mubr.bf16.mxu0 0
    %1042 = vmatmul.mubr.bf16.gmra.mxu0 %v895
    %v1043 = vpop.f32.mrf.mxu0
    %v1044 = vadd.f32 %v919, %v1043
    %v1045 = vpop.f32.mrf.mxu0
    %v1046 = vpop.f32.mrf.mxu0
    %v1047 = vadd.f32 %v919, %v1046
    %v1048 = vpop.f32.mrf.mxu0
    %1049 = vmatprep.mubr.bf16.mxu0 0
    %1050 = vmatmul.mubr.bf16.gmra.mxu0 %v896
    %v1051 = vpop.f32.mrf.mxu0
    %v1052 = vadd.f32 %v919, %v1051
    %v1053 = vpop.f32.mrf.mxu0
    %v1054 = vpop.f32.mrf.mxu0
    %v1055 = vadd.f32 %v919, %v1054
    %v1056 = vpop.f32.mrf.mxu0
    %1057 = vmatprep.mubr.bf16.mxu0 0
    %1058 = vmatmul.mubr.bf16.gmra.mxu0 %v897
    %v1059 = vpop.f32.mrf.mxu0
    %v1060 = vadd.f32 %v919, %v1059
    %v1061 = vpop.f32.mrf.mxu0
    %v1062 = vpop.f32.mrf.mxu0
    %v1063 = vadd.f32 %v919, %v1062
    %v1064 = vpop.f32.mrf.mxu0
    %1065 = vdwg.mxu0
    %1066 = vst [vmem:[%s9] sm:$0xff] %v1004
    %1067 = vst [vmem:[%s9 + $0x8] sm:$0xff] %v1007
    %1068 = vst [vmem:[%s9 + $0x10] sm:$0xff] %v1012
    %1069 = vst [vmem:[%s9 + $0x18] sm:$0xff] %v1015
    %1070 = vst [vmem:[%s9 + $0x20] sm:$0xff] %v1020
    %1071 = vst [vmem:[%s9 + $0x28] sm:$0xff] %v1023
    %1072 = vst [vmem:[%s9 + $0x30] sm:$0xff] %v1028
    %1073 = vst [vmem:[%s9 + $0x38] sm:$0xff] %v1031
    %1074 = vst [vmem:[%s9 + $0x40] sm:$0xff] %v1036
    %1075 = vst [vmem:[%s9 + $0x48] sm:$0xff] %v1039
    %1076 = vst [vmem:[%s9 + $0x50] sm:$0xff] %v1044
    %1077 = vst [vmem:[%s9 + $0x58] sm:$0xff] %v1047
    %1078 = vst [vmem:[%s9 + $0x60] sm:$0xff] %v1052
    %1079 = vst [vmem:[%s9 + $0x68] sm:$0xff] %v1055
    %1080 = vst [vmem:[%s9 + $0x70] sm:$0xff] %v1060
    %1081 = vst [vmem:[%s9 + $0x78] sm:$0xff] %v1063
  $region45: #{gnn_forward.3} parent=0 // pred_fallthru
    _
  // Predicated region
  $region46: #{gnn_forward.3} parent=0 // pred_check
    _
  $region47: #{gnn_forward.3} parent=0 // pred_check_branch
    %1083 = sbr.rel (0) target = $region49
  $region48: #{gnn_forward.3} parent=0 // pred_region
    _
  $region49: #{gnn_forward.3} parent=0 // pred_fallthru
    _
  // Predicated region
  $region50: #{gnn_forward.3} parent=0 // pred_check
    _
  $region51: #{gnn_forward.3} parent=0 // pred_check_branch
    %1085 = sbr.rel (0) target = $region53
  $region52: #{gnn_forward.3} parent=0 // pred_region
    _
  $region53: #{gnn_forward.3} parent=0 // pred_fallthru
    _

// kernel: gnn_forward.2
$region0: #{gnn_forward.2}
  #allocation0 [shape = 'u32[]', space=smem, size = 0x4, offset = 0x4, fixed_abs, tag = 'smem constant byte address 0x4 - core index']
  #allocation1 [shape = 'u32[144,128]{1,0:T(1,128)}', space=vmem, size = 0x12000, scoped, tag = 'internal scratch']
  #allocation2 [shape = 'f32[128,128]{1,0:T(8,128)}', space=vmem, size = 0x10000, scoped, tag = 'scratch operand']
  %s0 = inlined_call_operand.vmem [shape: bf16[128,128], index: 0, kind: input, shape index: {}]
  %s1 = inlined_call_operand.vmem [shape: bf16[128,128], index: 1, kind: input, shape index: {}, may-alias: {1,2}]
  %s2 = inlined_call_operand.vmem [shape: bf16[128,128], index: 2, kind: input, shape index: {}, may-alias: {1,2}]
  %s3 = inlined_call_operand.vmem [shape: f32[128,1], index: 3, kind: input, shape index: {}]
  %s4 = inlined_call_operand.vmem [shape: bf16[128,128], index: 4, kind: input, shape index: {}]
  %s5 = inlined_call_operand.vmem [shape: bf16[128,128], index: 5, kind: input, shape index: {}]
  %s6 = inlined_call_operand.vmem [shape: f32[1,128], index: 6, kind: input, shape index: {}]
  %s7 = inlined_call_operand.vmem [shape: bf16[128,128], index: 7, kind: output, shape index: {}]
  %s8 = sld [smem:[#allocation0]]
  $region46: #{gnn_forward.2} parent=0
    _
  %s10 = ssub.s32 1, %s8
  %s11 = scalar_select 0, %s10, %s8
  // Predicated region
  $region2: #{gnn_forward.2} parent=0 // pred_check
    _
  $region3: #{gnn_forward.2} parent=0 // pred_check_branch
    %13 = sbr.rel (0) target = $region5
  $region4: #{gnn_forward.2} parent=0 // pred_region
    _
  $region5: #{gnn_forward.2} parent=0 // pred_fallthru
    _
  // Predicated region
  $region6: #{gnn_forward.2} parent=0 // pred_check
    _
  $region7: #{gnn_forward.2} parent=0 // pred_check_branch
    %15 = sbr.rel (0) target = $region9
  $region8: #{gnn_forward.2} parent=0 // pred_region
    _
  $region9: #{gnn_forward.2} parent=0 // pred_fallthru
    _
  // Predicated region
  $region10: #{gnn_forward.2} parent=0 // pred_check
    _
  $region11: #{gnn_forward.2} parent=0 // pred_check_branch
    %17 = sbr.rel (0) target = $region13
  $region12: #{gnn_forward.2} parent=0 // pred_region
    _
  $region13: #{gnn_forward.2} parent=0 // pred_fallthru
    _
  // Predicated region
  $region14: #{gnn_forward.2} parent=0 // pred_check
    _
  $region15: #{gnn_forward.2} parent=0 // pred_check_branch
    %19 = sbr.rel (0) target = $region17
  $region16: #{gnn_forward.2} parent=0 // pred_region
    _
  $region17: #{gnn_forward.2} parent=0 // pred_fallthru
    _
  // Predicated region
  $region18: #{gnn_forward.2} parent=0 // pred_check
    _
  $region19: #{gnn_forward.2} parent=0 // pred_check_branch
    %21 = sbr.rel (0) target = $region21
  $region20: #{gnn_forward.2} parent=0 // pred_region
    _
  $region21: #{gnn_forward.2} parent=0 // pred_fallthru
    _
  // Predicated region
  $region22: #{gnn_forward.2} parent=0 // pred_check
    _
  $region23: #{gnn_forward.2} parent=0 // pred_check_branch
    %23 = sbr.rel (0) target = $region25
  $region24: #{gnn_forward.2} parent=0 // pred_region
    _
  $region25: #{gnn_forward.2} parent=0 // pred_fallthru
    _
  // Predicated region
  $region26: #{gnn_forward.2} parent=0 // pred_check
    _
  $region27: #{gnn_forward.2} parent=0 // pred_check_branch
    %25 = sbr.rel (0) target = $region29
  $region28: #{gnn_forward.2} parent=0 // pred_region
    _
  $region29: #{gnn_forward.2} parent=0 // pred_fallthru
    _
  %p27 = scmp.eq.s32.totalorder 0, 0
  // Predicated region
  $region30: #{gnn_forward.2} parent=0 // pred_check
    %p28 = pneg %p27
  $region31: #{gnn_forward.2} parent=0 // pred_check_branch
    %30 = sbr.rel (%p28) target = $region33
  $region32: #{gnn_forward.2} parent=0 // pred_region
    %31 = vst [vmem:[#allocation2] sm:$0xff] 0.0
    %32 = vst [vmem:[#allocation2 + $0x8] sm:$0xff] 0.0
    %33 = vst [vmem:[#allocation2 + $0x10] sm:$0xff] 0.0
    %34 = vst [vmem:[#allocation2 + $0x18] sm:$0xff] 0.0
    %35 = vst [vmem:[#allocation2 + $0x20] sm:$0xff] 0.0
    %36 = vst [vmem:[#allocation2 + $0x28] sm:$0xff] 0.0
    %37 = vst [vmem:[#allocation2 + $0x30] sm:$0xff] 0.0
    %38 = vst [vmem:[#allocation2 + $0x38] sm:$0xff] 0.0
    %39 = vst [vmem:[#allocation2 + $0x40] sm:$0xff] 0.0
    %40 = vst [vmem:[#allocation2 + $0x48] sm:$0xff] 0.0
    %41 = vst [vmem:[#allocation2 + $0x50] sm:$0xff] 0.0
    %42 = vst [vmem:[#allocation2 + $0x58] sm:$0xff] 0.0
    %43 = vst [vmem:[#allocation2 + $0x60] sm:$0xff] 0.0
    %44 = vst [vmem:[#allocation2 + $0x68] sm:$0xff] 0.0
    %45 = vst [vmem:[#allocation2 + $0x70] sm:$0xff] 0.0
    %46 = vst [vmem:[#allocation2 + $0x78] sm:$0xff] 0.0
  $region33: #{gnn_forward.2} parent=0 // pred_fallthru
    _
  %v47 = vld [vmem:[#allocation2] sm:$0xff]
  %v48 = vld [vmem:[#allocation2 + $0x8] sm:$0xff]
  %v49 = vld [vmem:[#allocation2 + $0x10] sm:$0xff]
  %v50 = vld [vmem:[#allocation2 + $0x18] sm:$0xff]
  %v51 = vld [vmem:[#allocation2 + $0x20] sm:$0xff]
  %v52 = vld [vmem:[#allocation2 + $0x28] sm:$0xff]
  %v53 = vld [vmem:[#allocation2 + $0x30] sm:$0xff]
  %v54 = vld [vmem:[#allocation2 + $0x38] sm:$0xff]
  %v55 = vld [vmem:[#allocation2 + $0x40] sm:$0xff]
  %v56 = vld [vmem:[#allocation2 + $0x48] sm:$0xff]
  %v57 = vld [vmem:[#allocation2 + $0x50] sm:$0xff]
  %v58 = vld [vmem:[#allocation2 + $0x58] sm:$0xff]
  %v59 = vld [vmem:[#allocation2 + $0x60] sm:$0xff]
  %v60 = vld [vmem:[#allocation2 + $0x68] sm:$0xff]
  %v61 = vld [vmem:[#allocation2 + $0x70] sm:$0xff]
  %v62 = vld [vmem:[#allocation2 + $0x78] sm:$0xff]
  %v63 = vld [vmem:[%s0] sm:$0xf]
  %v64 = vld [vmem:[%s0 + $0x4] sm:$0xf]
  %v65 = vld [vmem:[%s0 + $0x8] sm:$0xf]
  %v66 = vld [vmem:[%s0 + $0xc] sm:$0xf]
  %v67 = vld [vmem:[%s0 + $0x10] sm:$0xf]
  %v68 = vld [vmem:[%s0 + $0x14] sm:$0xf]
  %v69 = vld [vmem:[%s0 + $0x18] sm:$0xf]
  %v70 = vld [vmem:[%s0 + $0x1c] sm:$0xf]
  %v71 = vld [vmem:[%s0 + $0x20] sm:$0xf]
  %v72 = vld [vmem:[%s0 + $0x24] sm:$0xf]
  %v73 = vld [vmem:[%s0 + $0x28] sm:$0xf]
  %v74 = vld [vmem:[%s0 + $0x2c] sm:$0xf]
  %v75 = vld [vmem:[%s0 + $0x30] sm:$0xf]
  %v76 = vld [vmem:[%s0 + $0x34] sm:$0xf]
  %v77 = vld [vmem:[%s0 + $0x38] sm:$0xf]
  %v78 = vld [vmem:[%s0 + $0x3c] sm:$0xf]
  %v79 = vld [vmem:[%s1] sm:$0xf]
  %v80 = vld [vmem:[%s1 + $0x4] sm:$0xf]
  %v81 = vld [vmem:[%s1 + $0x8] sm:$0xf]
  %v82 = vld [vmem:[%s1 + $0xc] sm:$0xf]
  %v83 = vld [vmem:[%s1 + $0x10] sm:$0xf]
  %v84 = vld [vmem:[%s1 + $0x14] sm:$0xf]
  %v85 = vld [vmem:[%s1 + $0x18] sm:$0xf]
  %v86 = vld [vmem:[%s1 + $0x1c] sm:$0xf]
  %v87 = vld [vmem:[%s1 + $0x20] sm:$0xf]
  %v88 = vld [vmem:[%s1 + $0x24] sm:$0xf]
  %v89 = vld [vmem:[%s1 + $0x28] sm:$0xf]
  %v90 = vld [vmem:[%s1 + $0x2c] sm:$0xf]
  %v91 = vld [vmem:[%s1 + $0x30] sm:$0xf]
  %v92 = vld [vmem:[%s1 + $0x34] sm:$0xf]
  %v93 = vld [vmem:[%s1 + $0x38] sm:$0xf]
  %v94 = vld [vmem:[%s1 + $0x3c] sm:$0xf]
  %v111 = vunpack.c.l.b16 %v63
  %v112 = vunpack.c.l.b16 %v64
  %v113 = vunpack.c.l.b16 %v65
  %v114 = vunpack.c.l.b16 %v66
  %v115 = vunpack.c.l.b16 %v67
  %v116 = vunpack.c.l.b16 %v68
  %v117 = vunpack.c.l.b16 %v69
  %v118 = vunpack.c.l.b16 %v70
  %v119 = vunpack.c.l.b16 %v71
  %v120 = vunpack.c.l.b16 %v72
  %v121 = vunpack.c.l.b16 %v73
  %v122 = vunpack.c.l.b16 %v74
  %v123 = vunpack.c.l.b16 %v75
  %v124 = vunpack.c.l.b16 %v76
  %v125 = vunpack.c.l.b16 %v77
  %v126 = vunpack.c.l.b16 %v78
  %v127 = vpack.c.b16 %v112, %v111
  %v128 = vpack.c.b16 %v114, %v113
  %v129 = vpack.c.b16 %v116, %v115
  %v130 = vpack.c.b16 %v118, %v117
  %v131 = vpack.c.b16 %v120, %v119
  %v132 = vpack.c.b16 %v122, %v121
  %v133 = vpack.c.b16 %v124, %v123
  %v134 = vpack.c.b16 %v126, %v125
  %v159 = vunpack.c.l.b16 %v79
  %v160 = vunpack.c.l.b16 %v80
  %v161 = vunpack.c.l.b16 %v81
  %v162 = vunpack.c.l.b16 %v82
  %v163 = vunpack.c.l.b16 %v83
  %v164 = vunpack.c.l.b16 %v84
  %v165 = vunpack.c.l.b16 %v85
  %v166 = vunpack.c.l.b16 %v86
  %v167 = vunpack.c.l.b16 %v87
  %v168 = vunpack.c.l.b16 %v88
  %v169 = vunpack.c.l.b16 %v89
  %v170 = vunpack.c.l.b16 %v90
  %v171 = vunpack.c.l.b16 %v91
  %v172 = vunpack.c.l.b16 %v92
  %v173 = vunpack.c.l.b16 %v93
  %v174 = vunpack.c.l.b16 %v94
  %v175 = vpack.c.b16 %v160, %v159
  %v176 = vpack.c.b16 %v162, %v161
  %v177 = vpack.c.b16 %v164, %v163
  %v178 = vpack.c.b16 %v166, %v165
  %v179 = vpack.c.b16 %v168, %v167
  %v180 = vpack.c.b16 %v170, %v169
  %v181 = vpack.c.b16 %v172, %v171
  %v182 = vpack.c.b16 %v174, %v173
  %191 = vmatprep.subr.bf16.mxu0 0
  %192 = vmatpush1.bf16.msra.mxu0 %v182
  %193 = vmatprep.subr.bf16.mxu0 0
  %194 = vmatpush1.bf16.msra.mxu0 %v181
  %195 = vmatprep.subr.bf16.mxu0 0
  %196 = vmatpush1.bf16.msra.mxu0 %v180
  %197 = vmatprep.subr.bf16.mxu0 0
  %198 = vmatpush1.bf16.msra.mxu0 %v179
  %199 = vmatprep.subr.bf16.mxu0 0
  %200 = vmatpush1.bf16.msra.mxu0 %v178
  %201 = vmatprep.subr.bf16.mxu0 0
  %202 = vmatpush1.bf16.msra.mxu0 %v177
  %203 = vmatprep.subr.bf16.mxu0 0
  %204 = vmatpush1.bf16.msra.mxu0 %v176
  %205 = vmatprep.subr.bf16.mxu0 0
  %206 = vmatpush1.bf16.msra.mxu0 %v175
  %207 = vmatprep.subr.bf16.mxu0 0
  %208 = vmatpush2.bf16.msra.mxu0 0
  %209 = vmatprep.subr.bf16.mxu0 0
  %210 = vmatpush2.bf16.msra.mxu0 0
  %211 = vmatprep.subr.bf16.mxu0 0
  %212 = vmatpush2.bf16.msra.mxu0 0
  %213 = vmatprep.subr.bf16.mxu0 0
  %214 = vmatpush2.bf16.msra.mxu0 0
  %215 = vmatprep.subr.bf16.mxu0 0
  %216 = vmatpush2.bf16.msra.mxu0 0
  %217 = vmatprep.subr.bf16.mxu0 0
  %218 = vmatpush2.bf16.msra.mxu0 0
  %219 = vmatprep.subr.bf16.mxu0 0
  %220 = vmatpush2.bf16.msra.mxu0 0
  %221 = vmatprep.subr.bf16.mxu0 0
  %222 = vmatpush2.bf16.msra.mxu0 0
  %223 = vmatprep.mubr.bf16.mxu0 0
  %224 = vmatmul.mubr.bf16.gmra.mxu0 %v127
  %v225 = vpop.f32.mrf.mxu0
  %v226 = vadd.f32 0.0, %v225
  %v227 = vpop.f32.mrf.mxu0
  %v228 = vpop.f32.mrf.mxu0
  %v229 = vadd.f32 0.0, %v228
  %v230 = vpop.f32.mrf.mxu0
  %231 = vmatprep.mubr.bf16.mxu0 0
  %232 = vmatmul.mubr.bf16.gmra.mxu0 %v128
  %v233 = vpop.f32.mrf.mxu0
  %v234 = vadd.f32 0.0, %v233
  %v235 = vpop.f32.mrf.mxu0
  %v236 = vpop.f32.mrf.mxu0
  %v237 = vadd.f32 0.0, %v236
  %v238 = vpop.f32.mrf.mxu0
  %239 = vmatprep.mubr.bf16.mxu0 0
  %240 = vmatmul.mubr.bf16.gmra.mxu0 %v129
  %v241 = vpop.f32.mrf.mxu0
  %v242 = vadd.f32 0.0, %v241
  %v243 = vpop.f32.mrf.mxu0
  %v244 = vpop.f32.mrf.mxu0
  %v245 = vadd.f32 0.0, %v244
  %v246 = vpop.f32.mrf.mxu0
  %247 = vmatprep.mubr.bf16.mxu0 0
  %248 = vmatmul.mubr.bf16.gmra.mxu0 %v130
  %v249 = vpop.f32.mrf.mxu0
  %v250 = vadd.f32 0.0, %v249
  %v251 = vpop.f32.mrf.mxu0
  %v252 = vpop.f32.mrf.mxu0
  %v253 = vadd.f32 0.0, %v252
  %v254 = vpop.f32.mrf.mxu0
  %255 = vmatprep.mubr.bf16.mxu0 0
  %256 = vmatmul.mubr.bf16.gmra.mxu0 %v131
  %v257 = vpop.f32.mrf.mxu0
  %v258 = vadd.f32 0.0, %v257
  %v259 = vpop.f32.mrf.mxu0
  %v260 = vpop.f32.mrf.mxu0
  %v261 = vadd.f32 0.0, %v260
  %v262 = vpop.f32.mrf.mxu0
  %263 = vmatprep.mubr.bf16.mxu0 0
  %264 = vmatmul.mubr.bf16.gmra.mxu0 %v132
  %v265 = vpop.f32.mrf.mxu0
  %v266 = vadd.f32 0.0, %v265
  %v267 = vpop.f32.mrf.mxu0
  %v268 = vpop.f32.mrf.mxu0
  %v269 = vadd.f32 0.0, %v268
  %v270 = vpop.f32.mrf.mxu0
  %271 = vmatprep.mubr.bf16.mxu0 0
  %272 = vmatmul.mubr.bf16.gmra.mxu0 %v133
  %v273 = vpop.f32.mrf.mxu0
  %v274 = vadd.f32 0.0, %v273
  %v275 = vpop.f32.mrf.mxu0
  %v276 = vpop.f32.mrf.mxu0
  %v277 = vadd.f32 0.0, %v276
  %v278 = vpop.f32.mrf.mxu0
  %279 = vmatprep.mubr.bf16.mxu0 0
  %280 = vmatmul.mubr.bf16.gmra.mxu0 %v134
  %v281 = vpop.f32.mrf.mxu0
  %v282 = vadd.f32 0.0, %v281
  %v283 = vpop.f32.mrf.mxu0
  %v284 = vpop.f32.mrf.mxu0
  %v285 = vadd.f32 0.0, %v284
  %v286 = vpop.f32.mrf.mxu0
  %287 = vdwg.mxu0
  %v288 = vadd.f32 %v47, %v226
  %v289 = vadd.f32 %v48, %v229
  %v290 = vadd.f32 %v49, %v234
  %v291 = vadd.f32 %v50, %v237
  %v292 = vadd.f32 %v51, %v242
  %v293 = vadd.f32 %v52, %v245
  %v294 = vadd.f32 %v53, %v250
  %v295 = vadd.f32 %v54, %v253
  %v296 = vadd.f32 %v55, %v258
  %v297 = vadd.f32 %v56, %v261
  %v298 = vadd.f32 %v57, %v266
  %v299 = vadd.f32 %v58, %v269
  %v300 = vadd.f32 %v59, %v274
  %v301 = vadd.f32 %v60, %v277
  %v302 = vadd.f32 %v61, %v282
  %v303 = vadd.f32 %v62, %v285
  %304 = vst [vmem:[#allocation2] sm:$0xff] %v288
  %305 = vst [vmem:[#allocation2 + $0x8] sm:$0xff] %v289
  %306 = vst [vmem:[#allocation2 + $0x10] sm:$0xff] %v290
  %307 = vst [vmem:[#allocation2 + $0x18] sm:$0xff] %v291
  %308 = vst [vmem:[#allocation2 + $0x20] sm:$0xff] %v292
  %309 = vst [vmem:[#allocation2 + $0x28] sm:$0xff] %v293
  %310 = vst [vmem:[#allocation2 + $0x30] sm:$0xff] %v294
  %311 = vst [vmem:[#allocation2 + $0x38] sm:$0xff] %v295
  %312 = vst [vmem:[#allocation2 + $0x40] sm:$0xff] %v296
  %313 = vst [vmem:[#allocation2 + $0x48] sm:$0xff] %v297
  %314 = vst [vmem:[#allocation2 + $0x50] sm:$0xff] %v298
  %315 = vst [vmem:[#allocation2 + $0x58] sm:$0xff] %v299
  %316 = vst [vmem:[#allocation2 + $0x60] sm:$0xff] %v300
  %317 = vst [vmem:[#allocation2 + $0x68] sm:$0xff] %v301
  %318 = vst [vmem:[#allocation2 + $0x70] sm:$0xff] %v302
  %319 = vst [vmem:[#allocation2 + $0x78] sm:$0xff] %v303
  // Predicated region
  $region34: #{gnn_forward.2} parent=0 // pred_check
    %p320 = pneg %p27
  $region35: #{gnn_forward.2} parent=0 // pred_check_branch
    %322 = sbr.rel (%p320) target = $region37
  $region36: #{gnn_forward.2} parent=0 // pred_region
    %v323 = vld [vmem:[#allocation2] sm:$0xff]
    %v324 = vld [vmem:[#allocation2 + $0x8] sm:$0xff]
    %v325 = vld [vmem:[#allocation2 + $0x10] sm:$0xff]
    %v326 = vld [vmem:[#allocation2 + $0x18] sm:$0xff]
    %v327 = vld [vmem:[#allocation2 + $0x20] sm:$0xff]
    %v328 = vld [vmem:[#allocation2 + $0x28] sm:$0xff]
    %v329 = vld [vmem:[#allocation2 + $0x30] sm:$0xff]
    %v330 = vld [vmem:[#allocation2 + $0x38] sm:$0xff]
    %v331 = vld [vmem:[#allocation2 + $0x40] sm:$0xff]
    %v332 = vld [vmem:[#allocation2 + $0x48] sm:$0xff]
    %v333 = vld [vmem:[#allocation2 + $0x50] sm:$0xff]
    %v334 = vld [vmem:[#allocation2 + $0x58] sm:$0xff]
    %v335 = vld [vmem:[#allocation2 + $0x60] sm:$0xff]
    %v336 = vld [vmem:[#allocation2 + $0x68] sm:$0xff]
    %v337 = vld [vmem:[#allocation2 + $0x70] sm:$0xff]
    %v338 = vld [vmem:[#allocation2 + $0x78] sm:$0xff]
    %v339 = vld [vmem:[%s3] sm:$0xff]
    %v340 = vld [vmem:[%s3 + $0x8] sm:$0xff]
    %v341 = vld [vmem:[%s3 + $0x10] sm:$0xff]
    %v342 = vld [vmem:[%s3 + $0x18] sm:$0xff]
    %v343 = vld [vmem:[%s3 + $0x20] sm:$0xff]
    %v344 = vld [vmem:[%s3 + $0x28] sm:$0xff]
    %v345 = vld [vmem:[%s3 + $0x30] sm:$0xff]
    %v346 = vld [vmem:[%s3 + $0x38] sm:$0xff]
    %v347 = vld [vmem:[%s3 + $0x40] sm:$0xff]
    %v348 = vld [vmem:[%s3 + $0x48] sm:$0xff]
    %v349 = vld [vmem:[%s3 + $0x50] sm:$0xff]
    %v350 = vld [vmem:[%s3 + $0x58] sm:$0xff]
    %v351 = vld [vmem:[%s3 + $0x60] sm:$0xff]
    %v352 = vld [vmem:[%s3 + $0x68] sm:$0xff]
    %v353 = vld [vmem:[%s3 + $0x70] sm:$0xff]
    %v354 = vld [vmem:[%s3 + $0x78] sm:$0xff]
    %356 = vset.pattern.permute.xlu0 0
    %357 = vperm.xlu0 %356, %v339
    %v358 = vpop.permute.xlu0 %357
    %361 = vset.pattern.permute.xlu0 0
    %362 = vperm.xlu0 %361, %v340
    %v363 = vpop.permute.xlu0 %362
    %366 = vset.pattern.permute.xlu0 0
    %367 = vperm.xlu0 %366, %v341
    %v368 = vpop.permute.xlu0 %367
    %371 = vset.pattern.permute.xlu0 0
    %372 = vperm.xlu0 %371, %v342
    %v373 = vpop.permute.xlu0 %372
    %376 = vset.pattern.permute.xlu0 0
    %377 = vperm.xlu0 %376, %v343
    %v378 = vpop.permute.xlu0 %377
    %381 = vset.pattern.permute.xlu0 0
    %382 = vperm.xlu0 %381, %v344
    %v383 = vpop.permute.xlu0 %382
    %386 = vset.pattern.permute.xlu0 0
    %387 = vperm.xlu0 %386, %v345
    %v388 = vpop.permute.xlu0 %387
    %391 = vset.pattern.permute.xlu0 0
    %392 = vperm.xlu0 %391, %v346
    %v393 = vpop.permute.xlu0 %392
    %396 = vset.pattern.permute.xlu0 0
    %397 = vperm.xlu0 %396, %v347
    %v398 = vpop.permute.xlu0 %397
    %401 = vset.pattern.permute.xlu0 0
    %402 = vperm.xlu0 %401, %v348
    %v403 = vpop.permute.xlu0 %402
    %406 = vset.pattern.permute.xlu0 0
    %407 = vperm.xlu0 %406, %v349
    %v408 = vpop.permute.xlu0 %407
    %411 = vset.pattern.permute.xlu0 0
    %412 = vperm.xlu0 %411, %v350
    %v413 = vpop.permute.xlu0 %412
    %416 = vset.pattern.permute.xlu0 0
    %417 = vperm.xlu0 %416, %v351
    %v418 = vpop.permute.xlu0 %417
    %421 = vset.pattern.permute.xlu0 0
    %422 = vperm.xlu0 %421, %v352
    %v423 = vpop.permute.xlu0 %422
    %426 = vset.pattern.permute.xlu0 0
    %427 = vperm.xlu0 %426, %v353
    %v428 = vpop.permute.xlu0 %427
    %431 = vset.pattern.permute.xlu0 0
    %432 = vperm.xlu0 %431, %v354
    %v433 = vpop.permute.xlu0 %432
    %v435 = vmul.f32 %v323, %v358
    %v436 = vmul.f32 %v324, %v363
    %v437 = vmul.f32 %v325, %v368
    %v438 = vmul.f32 %v326, %v373
    %v439 = vmul.f32 %v327, %v378
    %v440 = vmul.f32 %v328, %v383
    %v441 = vmul.f32 %v329, %v388
    %v442 = vmul.f32 %v330, %v393
    %v443 = vmul.f32 %v331, %v398
    %v444 = vmul.f32 %v332, %v403
    %v445 = vmul.f32 %v333, %v408
    %v446 = vmul.f32 %v334, %v413
    %v447 = vmul.f32 %v335, %v418
    %v448 = vmul.f32 %v336, %v423
    %v449 = vmul.f32 %v337, %v428
    %v450 = vmul.f32 %v338, %v433
    %v451 = vpack.c.bf16 %v436, %v435
    %v452 = vpack.c.bf16 %v438, %v437
    %v453 = vpack.c.bf16 %v440, %v439
    %v454 = vpack.c.bf16 %v442, %v441
    %v455 = vpack.c.bf16 %v444, %v443
    %v456 = vpack.c.bf16 %v446, %v445
    %v457 = vpack.c.bf16 %v448, %v447
    %v458 = vpack.c.bf16 %v450, %v449
    %v459 = vld [vmem:[%s4] sm:$0xf]
    %v460 = vld [vmem:[%s4 + $0x4] sm:$0xf]
    %v461 = vld [vmem:[%s4 + $0x8] sm:$0xf]
    %v462 = vld [vmem:[%s4 + $0xc] sm:$0xf]
    %v463 = vld [vmem:[%s4 + $0x10] sm:$0xf]
    %v464 = vld [vmem:[%s4 + $0x14] sm:$0xf]
    %v465 = vld [vmem:[%s4 + $0x18] sm:$0xf]
    %v466 = vld [vmem:[%s4 + $0x1c] sm:$0xf]
    %v467 = vld [vmem:[%s4 + $0x20] sm:$0xf]
    %v468 = vld [vmem:[%s4 + $0x24] sm:$0xf]
    %v469 = vld [vmem:[%s4 + $0x28] sm:$0xf]
    %v470 = vld [vmem:[%s4 + $0x2c] sm:$0xf]
    %v471 = vld [vmem:[%s4 + $0x30] sm:$0xf]
    %v472 = vld [vmem:[%s4 + $0x34] sm:$0xf]
    %v473 = vld [vmem:[%s4 + $0x38] sm:$0xf]
    %v474 = vld [vmem:[%s4 + $0x3c] sm:$0xf]
    %v475 = vld [vmem:[%s2] sm:$0xf]
    %v476 = vld [vmem:[%s2 + $0x4] sm:$0xf]
    %v477 = vld [vmem:[%s2 + $0x8] sm:$0xf]
    %v478 = vld [vmem:[%s2 + $0xc] sm:$0xf]
    %v479 = vld [vmem:[%s2 + $0x10] sm:$0xf]
    %v480 = vld [vmem:[%s2 + $0x14] sm:$0xf]
    %v481 = vld [vmem:[%s2 + $0x18] sm:$0xf]
    %v482 = vld [vmem:[%s2 + $0x1c] sm:$0xf]
    %v483 = vld [vmem:[%s2 + $0x20] sm:$0xf]
    %v484 = vld [vmem:[%s2 + $0x24] sm:$0xf]
    %v485 = vld [vmem:[%s2 + $0x28] sm:$0xf]
    %v486 = vld [vmem:[%s2 + $0x2c] sm:$0xf]
    %v487 = vld [vmem:[%s2 + $0x30] sm:$0xf]
    %v488 = vld [vmem:[%s2 + $0x34] sm:$0xf]
    %v489 = vld [vmem:[%s2 + $0x38] sm:$0xf]
    %v490 = vld [vmem:[%s2 + $0x3c] sm:$0xf]
    %v491 = vld [vmem:[%s5] sm:$0xf]
    %v492 = vld [vmem:[%s5 + $0x4] sm:$0xf]
    %v493 = vld [vmem:[%s5 + $0x8] sm:$0xf]
    %v494 = vld [vmem:[%s5 + $0xc] sm:$0xf]
    %v495 = vld [vmem:[%s5 + $0x10] sm:$0xf]
    %v496 = vld [vmem:[%s5 + $0x14] sm:$0xf]
    %v497 = vld [vmem:[%s5 + $0x18] sm:$0xf]
    %v498 = vld [vmem:[%s5 + $0x1c] sm:$0xf]
    %v499 = vld [vmem:[%s5 + $0x20] sm:$0xf]
    %v500 = vld [vmem:[%s5 + $0x24] sm:$0xf]
    %v501 = vld [vmem:[%s5 + $0x28] sm:$0xf]
    %v502 = vld [vmem:[%s5 + $0x2c] sm:$0xf]
    %v503 = vld [vmem:[%s5 + $0x30] sm:$0xf]
    %v504 = vld [vmem:[%s5 + $0x34] sm:$0xf]
    %v505 = vld [vmem:[%s5 + $0x38] sm:$0xf]
    %v506 = vld [vmem:[%s5 + $0x3c] sm:$0xf]
    %v523 = vunpack.c.l.b16 %v475
    %v524 = vunpack.c.l.b16 %v476
    %v525 = vunpack.c.l.b16 %v477
    %v526 = vunpack.c.l.b16 %v478
    %v527 = vunpack.c.l.b16 %v479
    %v528 = vunpack.c.l.b16 %v480
    %v529 = vunpack.c.l.b16 %v481
    %v530 = vunpack.c.l.b16 %v482
    %v531 = vunpack.c.l.b16 %v483
    %v532 = vunpack.c.l.b16 %v484
    %v533 = vunpack.c.l.b16 %v485
    %v534 = vunpack.c.l.b16 %v486
    %v535 = vunpack.c.l.b16 %v487
    %v536 = vunpack.c.l.b16 %v488
    %v537 = vunpack.c.l.b16 %v489
    %v538 = vunpack.c.l.b16 %v490
    %v539 = vpack.c.b16 %v524, %v523
    %v540 = vpack.c.b16 %v526, %v525
    %v541 = vpack.c.b16 %v528, %v527
    %v542 = vpack.c.b16 %v530, %v529
    %v543 = vpack.c.b16 %v532, %v531
    %v544 = vpack.c.b16 %v534, %v533
    %v545 = vpack.c.b16 %v536, %v535
    %v546 = vpack.c.b16 %v538, %v537
    %v571 = vunpack.c.l.b16 %v491
    %v572 = vunpack.c.l.b16 %v492
    %v573 = vunpack.c.l.b16 %v493
    %v574 = vunpack.c.l.b16 %v494
    %v575 = vunpack.c.l.b16 %v495
    %v576 = vunpack.c.l.b16 %v496
    %v577 = vunpack.c.l.b16 %v497
    %v578 = vunpack.c.l.b16 %v498
    %v579 = vunpack.c.l.b16 %v499
    %v580 = vunpack.c.l.b16 %v500
    %v581 = vunpack.c.l.b16 %v501
    %v582 = vunpack.c.l.b16 %v502
    %v583 = vunpack.c.l.b16 %v503
    %v584 = vunpack.c.l.b16 %v504
    %v585 = vunpack.c.l.b16 %v505
    %v586 = vunpack.c.l.b16 %v506
    %v587 = vpack.c.b16 %v572, %v571
    %v588 = vpack.c.b16 %v574, %v573
    %v589 = vpack.c.b16 %v576, %v575
    %v590 = vpack.c.b16 %v578, %v577
    %v591 = vpack.c.b16 %v580, %v579
    %v592 = vpack.c.b16 %v582, %v581
    %v593 = vpack.c.b16 %v584, %v583
    %v594 = vpack.c.b16 %v586, %v585
    %603 = vmatprep.subr.bf16.mxu0 0
    %604 = vmatpush1.bf16.msra.mxu0 %v594
    %605 = vmatprep.subr.bf16.mxu0 0
    %606 = vmatpush1.bf16.msra.mxu0 %v593
    %607 = vmatprep.subr.bf16.mxu0 0
    %608 = vmatpush1.bf16.msra.mxu0 %v592
    %609 = vmatprep.subr.bf16.mxu0 0
    %610 = vmatpush1.bf16.msra.mxu0 %v591
    %611 = vmatprep.subr.bf16.mxu0 0
    %612 = vmatpush1.bf16.msra.mxu0 %v590
    %613 = vmatprep.subr.bf16.mxu0 0
    %614 = vmatpush1.bf16.msra.mxu0 %v589
    %615 = vmatprep.subr.bf16.mxu0 0
    %616 = vmatpush1.bf16.msra.mxu0 %v588
    %617 = vmatprep.subr.bf16.mxu0 0
    %618 = vmatpush1.bf16.msra.mxu0 %v587
    %619 = vmatprep.subr.bf16.mxu0 0
    %620 = vmatpush2.bf16.msra.mxu0 0
    %621 = vmatprep.subr.bf16.mxu0 0
    %622 = vmatpush2.bf16.msra.mxu0 0
    %623 = vmatprep.subr.bf16.mxu0 0
    %624 = vmatpush2.bf16.msra.mxu0 0
    %625 = vmatprep.subr.bf16.mxu0 0
    %626 = vmatpush2.bf16.msra.mxu0 0
    %627 = vmatprep.subr.bf16.mxu0 0
    %628 = vmatpush2.bf16.msra.mxu0 0
    %629 = vmatprep.subr.bf16.mxu0 0
    %630 = vmatpush2.bf16.msra.mxu0 0
    %631 = vmatprep.subr.bf16.mxu0 0
    %632 = vmatpush2.bf16.msra.mxu0 0
    %633 = vmatprep.subr.bf16.mxu0 0
    %634 = vmatpush2.bf16.msra.mxu0 0
    %635 = vmatprep.mubr.bf16.mxu0 0
    %636 = vmatmul.mubr.bf16.gmra.mxu0 %v539
    %v637 = vpop.f32.mrf.mxu0
    %v638 = vadd.f32 0.0, %v637
    %v639 = vpop.f32.mrf.mxu0
    %v640 = vpop.f32.mrf.mxu0
    %v641 = vadd.f32 0.0, %v640
    %v642 = vpop.f32.mrf.mxu0
    %643 = vmatprep.mubr.bf16.mxu0 0
    %644 = vmatmul.mubr.bf16.gmra.mxu0 %v540
    %v645 = vpop.f32.mrf.mxu0
    %v646 = vadd.f32 0.0, %v645
    %v647 = vpop.f32.mrf.mxu0
    %v648 = vpop.f32.mrf.mxu0
    %v649 = vadd.f32 0.0, %v648
    %v650 = vpop.f32.mrf.mxu0
    %651 = vmatprep.mubr.bf16.mxu0 0
    %652 = vmatmul.mubr.bf16.gmra.mxu0 %v541
    %v653 = vpop.f32.mrf.mxu0
    %v654 = vadd.f32 0.0, %v653
    %v655 = vpop.f32.mrf.mxu0
    %v656 = vpop.f32.mrf.mxu0
    %v657 = vadd.f32 0.0, %v656
    %v658 = vpop.f32.mrf.mxu0
    %659 = vmatprep.mubr.bf16.mxu0 0
    %660 = vmatmul.mubr.bf16.gmra.mxu0 %v542
    %v661 = vpop.f32.mrf.mxu0
    %v662 = vadd.f32 0.0, %v661
    %v663 = vpop.f32.mrf.mxu0
    %v664 = vpop.f32.mrf.mxu0
    %v665 = vadd.f32 0.0, %v664
    %v666 = vpop.f32.mrf.mxu0
    %667 = vmatprep.mubr.bf16.mxu0 0
    %668 = vmatmul.mubr.bf16.gmra.mxu0 %v543
    %v669 = vpop.f32.mrf.mxu0
    %v670 = vadd.f32 0.0, %v669
    %v671 = vpop.f32.mrf.mxu0
    %v672 = vpop.f32.mrf.mxu0
    %v673 = vadd.f32 0.0, %v672
    %v674 = vpop.f32.mrf.mxu0
    %675 = vmatprep.mubr.bf16.mxu0 0
    %676 = vmatmul.mubr.bf16.gmra.mxu0 %v544
    %v677 = vpop.f32.mrf.mxu0
    %v678 = vadd.f32 0.0, %v677
    %v679 = vpop.f32.mrf.mxu0
    %v680 = vpop.f32.mrf.mxu0
    %v681 = vadd.f32 0.0, %v680
    %v682 = vpop.f32.mrf.mxu0
    %683 = vmatprep.mubr.bf16.mxu0 0
    %684 = vmatmul.mubr.bf16.gmra.mxu0 %v545
    %v685 = vpop.f32.mrf.mxu0
    %v686 = vadd.f32 0.0, %v685
    %v687 = vpop.f32.mrf.mxu0
    %v688 = vpop.f32.mrf.mxu0
    %v689 = vadd.f32 0.0, %v688
    %v690 = vpop.f32.mrf.mxu0
    %691 = vmatprep.mubr.bf16.mxu0 0
    %692 = vmatmul.mubr.bf16.gmra.mxu0 %v546
    %v693 = vpop.f32.mrf.mxu0
    %v694 = vadd.f32 0.0, %v693
    %v695 = vpop.f32.mrf.mxu0
    %v696 = vpop.f32.mrf.mxu0
    %v697 = vadd.f32 0.0, %v696
    %v698 = vpop.f32.mrf.mxu0
    %699 = vdwg.mxu0
    %v716 = vunpack.c.l.b16 %v459
    %v717 = vunpack.c.l.b16 %v460
    %v718 = vunpack.c.l.b16 %v461
    %v719 = vunpack.c.l.b16 %v462
    %v720 = vunpack.c.l.b16 %v463
    %v721 = vunpack.c.l.b16 %v464
    %v722 = vunpack.c.l.b16 %v465
    %v723 = vunpack.c.l.b16 %v466
    %v724 = vunpack.c.l.b16 %v467
    %v725 = vunpack.c.l.b16 %v468
    %v726 = vunpack.c.l.b16 %v469
    %v727 = vunpack.c.l.b16 %v470
    %v728 = vunpack.c.l.b16 %v471
    %v729 = vunpack.c.l.b16 %v472
    %v730 = vunpack.c.l.b16 %v473
    %v731 = vunpack.c.l.b16 %v474
    %v732 = vpack.c.b16 %v717, %v716
    %v733 = vpack.c.b16 %v719, %v718
    %v734 = vpack.c.b16 %v721, %v720
    %v735 = vpack.c.b16 %v723, %v722
    %v736 = vpack.c.b16 %v725, %v724
    %v737 = vpack.c.b16 %v727, %v726
    %v738 = vpack.c.b16 %v729, %v728
    %v739 = vpack.c.b16 %v731, %v730
    %748 = vmatprep.subr.bf16.mxu0 0
    %749 = vmatpush1.bf16.msra.mxu0 %v739
    %750 = vmatprep.subr.bf16.mxu0 0
    %751 = vmatpush1.bf16.msra.mxu0 %v738
    %752 = vmatprep.subr.bf16.mxu0 0
    %753 = vmatpush1.bf16.msra.mxu0 %v737
    %754 = vmatprep.subr.bf16.mxu0 0
    %755 = vmatpush1.bf16.msra.mxu0 %v736
    %756 = vmatprep.subr.bf16.mxu0 0
    %757 = vmatpush1.bf16.msra.mxu0 %v735
    %758 = vmatprep.subr.bf16.mxu0 0
    %759 = vmatpush1.bf16.msra.mxu0 %v734
    %760 = vmatprep.subr.bf16.mxu0 0
    %761 = vmatpush1.bf16.msra.mxu0 %v733
    %762 = vmatprep.subr.bf16.mxu0 0
    %763 = vmatpush1.bf16.msra.mxu0 %v732
    %764 = vmatprep.subr.bf16.mxu0 0
    %765 = vmatpush2.bf16.msra.mxu0 0
    %766 = vmatprep.subr.bf16.mxu0 0
    %767 = vmatpush2.bf16.msra.mxu0 0
    %768 = vmatprep.subr.bf16.mxu0 0
    %769 = vmatpush2.bf16.msra.mxu0 0
    %770 = vmatprep.subr.bf16.mxu0 0
    %771 = vmatpush2.bf16.msra.mxu0 0
    %772 = vmatprep.subr.bf16.mxu0 0
    %773 = vmatpush2.bf16.msra.mxu0 0
    %774 = vmatprep.subr.bf16.mxu0 0
    %775 = vmatpush2.bf16.msra.mxu0 0
    %776 = vmatprep.subr.bf16.mxu0 0
    %777 = vmatpush2.bf16.msra.mxu0 0
    %778 = vmatprep.subr.bf16.mxu0 0
    %779 = vmatpush2.bf16.msra.mxu0 0
    %780 = vmatprep.mubr.bf16.mxu0 0
    %781 = vmatmul.mubr.bf16.gmra.mxu0 %v451
    %v782 = vpop.f32.mrf.mxu0
    %v783 = vadd.f32 %v638, %v782
    %v784 = vpop.f32.mrf.mxu0
    %v785 = vpop.f32.mrf.mxu0
    %v786 = vadd.f32 %v641, %v785
    %v787 = vpop.f32.mrf.mxu0
    %788 = vmatprep.mubr.bf16.mxu0 0
    %789 = vmatmul.mubr.bf16.gmra.mxu0 %v452
    %v790 = vpop.f32.mrf.mxu0
    %v791 = vadd.f32 %v646, %v790
    %v792 = vpop.f32.mrf.mxu0
    %v793 = vpop.f32.mrf.mxu0
    %v794 = vadd.f32 %v649, %v793
    %v795 = vpop.f32.mrf.mxu0
    %796 = vmatprep.mubr.bf16.mxu0 0
    %797 = vmatmul.mubr.bf16.gmra.mxu0 %v453
    %v798 = vpop.f32.mrf.mxu0
    %v799 = vadd.f32 %v654, %v798
    %v800 = vpop.f32.mrf.mxu0
    %v801 = vpop.f32.mrf.mxu0
    %v802 = vadd.f32 %v657, %v801
    %v803 = vpop.f32.mrf.mxu0
    %804 = vmatprep.mubr.bf16.mxu0 0
    %805 = vmatmul.mubr.bf16.gmra.mxu0 %v454
    %v806 = vpop.f32.mrf.mxu0
    %v807 = vadd.f32 %v662, %v806
    %v808 = vpop.f32.mrf.mxu0
    %v809 = vpop.f32.mrf.mxu0
    %v810 = vadd.f32 %v665, %v809
    %v811 = vpop.f32.mrf.mxu0
    %812 = vmatprep.mubr.bf16.mxu0 0
    %813 = vmatmul.mubr.bf16.gmra.mxu0 %v455
    %v814 = vpop.f32.mrf.mxu0
    %v815 = vadd.f32 %v670, %v814
    %v816 = vpop.f32.mrf.mxu0
    %v817 = vpop.f32.mrf.mxu0
    %v818 = vadd.f32 %v673, %v817
    %v819 = vpop.f32.mrf.mxu0
    %820 = vmatprep.mubr.bf16.mxu0 0
    %821 = vmatmul.mubr.bf16.gmra.mxu0 %v456
    %v822 = vpop.f32.mrf.mxu0
    %v823 = vadd.f32 %v678, %v822
    %v824 = vpop.f32.mrf.mxu0
    %v825 = vpop.f32.mrf.mxu0
    %v826 = vadd.f32 %v681, %v825
    %v827 = vpop.f32.mrf.mxu0
    %828 = vmatprep.mubr.bf16.mxu0 0
    %829 = vmatmul.mubr.bf16.gmra.mxu0 %v457
    %v830 = vpop.f32.mrf.mxu0
    %v831 = vadd.f32 %v686, %v830
    %v832 = vpop.f32.mrf.mxu0
    %v833 = vpop.f32.mrf.mxu0
    %v834 = vadd.f32 %v689, %v833
    %v835 = vpop.f32.mrf.mxu0
    %836 = vmatprep.mubr.bf16.mxu0 0
    %837 = vmatmul.mubr.bf16.gmra.mxu0 %v458
    %v838 = vpop.f32.mrf.mxu0
    %v839 = vadd.f32 %v694, %v838
    %v840 = vpop.f32.mrf.mxu0
    %v841 = vpop.f32.mrf.mxu0
    %v842 = vadd.f32 %v697, %v841
    %v843 = vpop.f32.mrf.mxu0
    %844 = vdwg.mxu0
    %v845 = vld [vmem:[%s6] sm:$0x1]
    %v847 = vlaneseq
    %v848 = vshrl.u32 %v847, 7
    %v849 = vsub.s32 0, %v848
    %v850 = vrot.slane %v845, %v849
    %v852 = vadd.f32 %v783, %v850
    %v853 = vadd.f32 %v786, %v850
    %v854 = vadd.f32 %v791, %v850
    %v855 = vadd.f32 %v794, %v850
    %v856 = vadd.f32 %v799, %v850
    %v857 = vadd.f32 %v802, %v850
    %v858 = vadd.f32 %v807, %v850
    %v859 = vadd.f32 %v810, %v850
    %v860 = vadd.f32 %v815, %v850
    %v861 = vadd.f32 %v818, %v850
    %v862 = vadd.f32 %v823, %v850
    %v863 = vadd.f32 %v826, %v850
    %v864 = vadd.f32 %v831, %v850
    %v865 = vadd.f32 %v834, %v850
    %v866 = vadd.f32 %v839, %v850
    %v867 = vadd.f32 %v842, %v850
    %v868 = vmax.f32 %v852, 0.0
    %v869 = vmax.f32 %v853, 0.0
    %v870 = vmax.f32 %v854, 0.0
    %v871 = vmax.f32 %v855, 0.0
    %v872 = vmax.f32 %v856, 0.0
    %v873 = vmax.f32 %v857, 0.0
    %v874 = vmax.f32 %v858, 0.0
    %v875 = vmax.f32 %v859, 0.0
    %v876 = vmax.f32 %v860, 0.0
    %v877 = vmax.f32 %v861, 0.0
    %v878 = vmax.f32 %v862, 0.0
    %v879 = vmax.f32 %v863, 0.0
    %v880 = vmax.f32 %v864, 0.0
    %v881 = vmax.f32 %v865, 0.0
    %v882 = vmax.f32 %v866, 0.0
    %v883 = vmax.f32 %v867, 0.0
    %v884 = vpack.c.bf16 %v869, %v868
    %v885 = vpack.c.bf16 %v871, %v870
    %v886 = vpack.c.bf16 %v873, %v872
    %v887 = vpack.c.bf16 %v875, %v874
    %v888 = vpack.c.bf16 %v877, %v876
    %v889 = vpack.c.bf16 %v879, %v878
    %v890 = vpack.c.bf16 %v881, %v880
    %v891 = vpack.c.bf16 %v883, %v882
    %v900 = vunpack.c.l.b16 %v884
    %v901 = vunpack.c.h.b16 %v884
    %v902 = vunpack.c.l.b16 %v885
    %v903 = vunpack.c.h.b16 %v885
    %v904 = vunpack.c.l.b16 %v886
    %v905 = vunpack.c.h.b16 %v886
    %v906 = vunpack.c.l.b16 %v887
    %v907 = vunpack.c.h.b16 %v887
    %v908 = vunpack.c.l.b16 %v888
    %v909 = vunpack.c.h.b16 %v888
    %v910 = vunpack.c.l.b16 %v889
    %v911 = vunpack.c.h.b16 %v889
    %v912 = vunpack.c.l.b16 %v890
    %v913 = vunpack.c.h.b16 %v890
    %v914 = vunpack.c.l.b16 %v891
    %v915 = vunpack.c.h.b16 %v891
    %v916 = vpack.c.b16 %v900, %v900
    %v917 = vpack.c.b16 %v901, %v901
    %v918 = vpack.c.b16 %v902, %v902
    %v919 = vpack.c.b16 %v903, %v903
    %v920 = vpack.c.b16 %v904, %v904
    %v921 = vpack.c.b16 %v905, %v905
    %v922 = vpack.c.b16 %v906, %v906
    %v923 = vpack.c.b16 %v907, %v907
    %v924 = vpack.c.b16 %v908, %v908
    %v925 = vpack.c.b16 %v909, %v909
    %v926 = vpack.c.b16 %v910, %v910
    %v927 = vpack.c.b16 %v911, %v911
    %v928 = vpack.c.b16 %v912, %v912
    %v929 = vpack.c.b16 %v913, %v913
    %v930 = vpack.c.b16 %v914, %v914
    %v931 = vpack.c.b16 %v915, %v915
    %948 = vst [vmem:[%s7] sm:$0xf] %v916
    %949 = vst [vmem:[%s7 + $0x4] sm:$0xf] %v917
    %950 = vst [vmem:[%s7 + $0x8] sm:$0xf] %v918
    %951 = vst [vmem:[%s7 + $0xc] sm:$0xf] %v919
    %952 = vst [vmem:[%s7 + $0x10] sm:$0xf] %v920
    %953 = vst [vmem:[%s7 + $0x14] sm:$0xf] %v921
    %954 = vst [vmem:[%s7 + $0x18] sm:$0xf] %v922
    %955 = vst [vmem:[%s7 + $0x1c] sm:$0xf] %v923
    %956 = vst [vmem:[%s7 + $0x20] sm:$0xf] %v924
    %957 = vst [vmem:[%s7 + $0x24] sm:$0xf] %v925
    %958 = vst [vmem:[%s7 + $0x28] sm:$0xf] %v926
    %959 = vst [vmem:[%s7 + $0x2c] sm:$0xf] %v927
    %960 = vst [vmem:[%s7 + $0x30] sm:$0xf] %v928
    %961 = vst [vmem:[%s7 + $0x34] sm:$0xf] %v929
    %962 = vst [vmem:[%s7 + $0x38] sm:$0xf] %v930
    %963 = vst [vmem:[%s7 + $0x3c] sm:$0xf] %v931
  $region37: #{gnn_forward.2} parent=0 // pred_fallthru
    _
  // Predicated region
  $region38: #{gnn_forward.2} parent=0 // pred_check
    _
  $region39: #{gnn_forward.2} parent=0 // pred_check_branch
    %965 = sbr.rel (0) target = $region41
  $region40: #{gnn_forward.2} parent=0 // pred_region
    _
  $region41: #{gnn_forward.2} parent=0 // pred_fallthru
    _
  // Predicated region
  $region42: #{gnn_forward.2} parent=0 // pred_check
    _
  $region43: #{gnn_forward.2} parent=0 // pred_check_branch
    %967 = sbr.rel (0) target = $region45
  $region44: #{gnn_forward.2} parent=0 // pred_region
    _
  $region45: #{gnn_forward.2} parent=0 // pred_fallthru
    _

</llo_original>
